<compile_context>
chip_gen: v7x
topology: tpu7x:2x2x1
jax: 0.10.0
libtpu: 0.0.40
codegen_flags: <defaults>
</compile_context>

<pallas_src>
import functools

import jax
import jax.numpy as jnp
import numpy as np
from jax.experimental import pallas as pl
from jax.experimental.pallas import tpu as pltpu

EPS = 1e-5  # nn.InstanceNorm2d default (affine=False, biased variance)


def _round_up(x, m):
    return (x + m - 1) // m * m


def _pick_cout_tile(cout):
    """Largest Cout tile <= 64 dividing Cout (64 -> 4*CT = 256 MXU rows)."""
    if cout <= 64:
        return cout
    for ct in (64, 32, 16, 8, 4, 2, 1):
        if cout % ct == 0:
            return ct
    return cout


def _up_conv_kernel(xf_ref, w_ref, mask_ref, out_ref, *, H, W, Wp):
    # xf_ref  : (1, Cin, (H+3)*Wp)   bf16  flattened zero-padded input rows
    # w_ref   : (1, 3, 4*CT, 3*Cin)  bf16  polyphase conv weights, grouped by dx
    # mask_ref: (1, H*Wp)            f32   1.0 on real columns, 0.0 on the seam
    # out_ref : (1, 4, CT, H*Wp)     bf16  phase-major, lane-dense spatial
    HP = H * Wp
    ct = out_ref.shape[2]

    xf = xf_ref[0]                                      # (Cin, LF)

    # 3x3 conv as 3 accumulating MXU matmuls grouped by dx.  For each dx the
    # three dy tap slices start at dy*Wp (+ dx); Wp % 128 == 0 keeps the dy
    # offsets lane-aligned (static offsets, known to the compiler), so the
    # (3*Cin, HP) patch is built from aligned views plus a static 0/1/2-lane
    # shift for dx.  f32 accumulation.
    # TODO(synk): share the dx shift across the 3 dy slices with a single
    # pltpu.roll per dx (XLU slot) instead of per-slice lane shifts.
    y = None
    for dx in range(3):
        patch = jnp.concatenate(
            [xf[:, dy * Wp + dx: dy * Wp + dx + HP] for dy in range(3)],
            axis=0)                                     # (3*Cin, HP)
        part = jnp.dot(w_ref[0, dx], patch,
                       preferred_element_type=jnp.float32)
        y = part if y is None else y + part             # (4*CT, HP) f32
    y3 = y.reshape(4, ct, HP)                           # (phase, CT, HP)

    # InstanceNorm2d statistics over the full 2H x 2W extent (all 4 phases),
    # excluding the seam columns.  One pass: E[x], E[x^2], in f32.
    mask = mask_ref[...]                                # (1, HP), broadcasts
    ym = y3 * mask                                      # reused for normalize
    n_valid = 4.0 * H * W
    s1 = jnp.sum(jnp.sum(ym, axis=2, keepdims=True), axis=0, keepdims=True)
    s2 = jnp.sum(jnp.sum(ym * ym, axis=2, keepdims=True), axis=0, keepdims=True)
    mean = s1 / n_valid                                 # (1, CT, 1)
    var = jnp.maximum(s2 / n_valid - mean * mean, 0.0)  # clamp f32 cancellation
    inv_std = jax.lax.rsqrt(var + EPS)

    # Seam columns hold garbage after normalization; the wrapper slices them off.
    out_ref[0] = jnp.maximum((ym - mean) * inv_std, 0.0).astype(out_ref.dtype)


def _fused_phase_weights(w):
    """(Cout, Cin, 3, 3) -> (4, Cout, 3, 3, Cin) fused polyphase weights.

    Output pixel (2i+a, 2j+b) of the 3x3 conv on the nearest-2x-upsampled
    image only reads original pixels {i-1..i+1} x {j-1..j+1}; 3x3 taps that
    land on the same original pixel are summed.  Phase index ph = 2a+b; tap
    index (dy, dx) addresses padded-original row/col offsets.
    """
    cout, cin = w.shape[0], w.shape[1]
    groups = {
        0: ((0, (0,)), (1, (1, 2))),   # a=0: dy=0 <- ky0 ;   dy=1 <- ky1+ky2
        1: ((1, (0, 1)), (2, (2,))),   # a=1: dy=1 <- ky0+ky1; dy=2 <- ky2
    }
    w_all = jnp.zeros((4, cout, 3, 3, cin), jnp.float32)
    for a in (0, 1):
        for b in (0, 1):
            ph = 2 * a + b
            for dy, kys in groups[a]:
                for dx, kxs in groups[b]:
                    acc = jnp.zeros((cout, cin), jnp.float32)
                    for ky in kys:
                        for kx in kxs:
                            acc = acc + w[:, :, ky, kx].astype(jnp.float32)
                    w_all = w_all.at[ph, :, dy, dx, :].set(acc)
    return w_all


def up_conv_forward(x_nchw, w, b=None):
    """Pallas forward of up_conv.  x: (N, Cin, H, W); w: (Cout, Cin, 3, 3).
    b (Cout,) is accepted for API parity; InstanceNorm2d(affine=False) removes
    a per-channel constant exactly, so it is unused (dead work)."""
    del b
    N, Cin, H, W = x_nchw.shape
    Cout = w.shape[0]

    Wp = _round_up(W + 2, 128)       # lane-aligned row stride
    HP = H * Wp                      # lane extent seen by the kernel
    LF = (H + 3) * Wp                # flattened padded-input length
    CT = _pick_cout_tile(Cout)
    n_ct = Cout // CT

    # Zero-pad the ORIGINAL (pre-upsample) image: 1 top, 2 bottom (keeps every
    # tap slice in bounds), 1 left, Wp-W-1 right (lane alignment), then flatten
    # rows so each (dy, dx) tap is one contiguous lane slice.
    xpad = jnp.pad(x_nchw.astype(jnp.bfloat16),
                   ((0, 0), (0, 0), (1, 2), (1, Wp - W - 1)))
    xflat = xpad.reshape(N, Cin, LF)

    # Fused polyphase weights regrouped as (cout_tile, dx, phase*CT+c, dy*Cin+cin)
    # to match the kernel's dx-grouped patches and phase-major output rows.
    w5 = _fused_phase_weights(w)                            # (4, Cout, 3, 3, Cin)
    wk = w5.reshape(4, n_ct, CT, 3, 3, Cin)
    wk = jnp.transpose(wk, (1, 4, 0, 2, 3, 5))              # (t, dx, ph, c, dy, cin)
    wk = wk.reshape(n_ct, 3, 4 * CT, 3 * Cin).astype(jnp.bfloat16)

    # 1.0 on real output columns, 0.0 on the seam (col >= W within each Wp row).
    mask = (jnp.arange(HP) % Wp < W).astype(jnp.float32).reshape(1, HP)

    # Rough per-step VMEM working set -> explicit scoped-VMEM limit.
    work = (2 * Cin * LF * 2            # double-buffered input (bf16)
            + 2 * 4 * CT * HP * 2       # double-buffered output (bf16)
            + 3 * 4 * CT * 3 * Cin * 2  # weights (bf16)
            + HP * 4                    # mask (f32)
            + 2 * 4 * CT * HP * 4       # f32 accumulator + masked copy
            + 3 * Cin * HP * 2)         # one dx patch (bf16)
    vmem_limit = int(min(64 * 1024 * 1024, max(32 * 1024 * 1024, 2 * work)))

    kernel = functools.partial(_up_conv_kernel, H=H, W=W, Wp=Wp)
    # TODO(synk): for very large H*W, add an "arbitrary" H-tile grid axis with
    # accumulated sum/sum-of-squares (two-pass InstanceNorm) instead of holding
    # the full image per grid step.
    out = pl.pallas_call(
        kernel,
        out_shape=jax.ShapeDtypeStruct((N, 4, Cout, HP), jnp.bfloat16),
        grid_spec=pltpu.PrefetchScalarGridSpec(
            num_scalar_prefetch=0,
            grid=(N, n_ct),
            in_specs=[
                pl.BlockSpec((1, Cin, LF), lambda n, t: (n, 0, 0)),
                pl.BlockSpec((1, 3, 4 * CT, 3 * Cin), lambda n, t: (t, 0, 0, 0)),
                pl.BlockSpec((1, HP), lambda n, t: (0, 0)),
            ],
            out_specs=pl.BlockSpec((1, 4, CT, HP), lambda n, t: (n, 0, t, 0)),
        ),
        compiler_params=pltpu.CompilerParams(
            dimension_semantics=("parallel", "parallel"),
            vmem_limit_bytes=vmem_limit,
        ),
    )(xflat, wk, mask)

    # Un-interleave phases in bf16 (cheap): (N, 4, Cout, H*Wp) -> (N, Cout, 2H, 2W),
    # dropping the seam columns.  Final cast to f32 for module parity.
    # TODO(synk): consumers that can take the bf16 phase-major tensor directly
    # should skip this HBM round trip entirely.
    o = out.reshape(N, 2, 2, Cout, H, Wp)[..., :W]   # (N, a, b, Cout, H, W)
    o = jnp.transpose(o, (0, 3, 4, 1, 5, 2))         # (N, Cout, H, a, W, b)
    return o.reshape(N, Cout, 2 * H, 2 * W).astype(jnp.float32)


def _reference(x, w, b):
    """Pure-JAX reference matching the PyTorch module (f32 end to end)."""
    xu = jnp.repeat(jnp.repeat(x, 2, axis=2), 2, axis=3)      # nearest x2
    y = jax.lax.conv_general_dilated(
        xu, w, window_strides=(1, 1), padding=((1, 1), (1, 1)),
        dimension_numbers=("NCHW", "OIHW", "NCHW"))
    y = y + b.reshape(1, -1, 1, 1)
    mean = jnp.mean(y, axis=(2, 3), keepdims=True)
    var = jnp.mean((y - mean) ** 2, axis=(2, 3), keepdims=True)
    return jnp.maximum((y - mean) * jax.lax.rsqrt(var + EPS), 0.0)


if __name__ == "__main__":
    N, Cin, Cout, H, W = 2, 4, 8, 16, 16

    key = jax.random.PRNGKey(0)
    kx, kw, kb = jax.random.split(key, 3)
    x = jax.random.normal(kx, (N, Cin, H, W), jnp.float32)
    w = jax.random.normal(kw, (Cout, Cin, 3, 3), jnp.float32) * 0.1
    b = jax.random.normal(kb, (Cout,), jnp.float32) * 0.1

    out = jax.block_until_ready(up_conv_forward(x, w, b))
    assert out.shape == (N, Cout, 2 * H, 2 * W)

    ref = jax.block_until_ready(_reference(x, w, b))
    # bf16 matmul operands and bf16 kernel output (f32 accumulation / f32 IN
    # statistics) -> relaxed tolerance.
    np.testing.assert_allclose(np.asarray(out), np.asarray(ref), atol=5e-2, rtol=5e-2)

    print("KERNEL_OK")
</pallas_src>

<mosaic_0001>
module attributes {stable_mosaic.version = 11 : i64} {
  func.func @_up_conv_kernel(%arg0: i32, %arg1: i32, %arg2: memref<1x4x2432xbf16, #tpu.memory_space<vmem>>, %arg3: memref<1x3x32x12xbf16, #tpu.memory_space<vmem>>, %arg4: memref<1x2048xf32, #tpu.memory_space<vmem>>, %arg5: memref<1x4x8x2048xbf16, #tpu.memory_space<vmem>>) attributes {dimension_semantics = [#tpu.dimension_semantics<parallel>, #tpu.dimension_semantics<parallel>], iteration_bounds = array<i64: 2, 1>, scalar_prefetch = 0 : i64, scratch_operands = 0 : i64, tpu.core_type = #tpu.core_type<tc>, window_params = [{transform_indices = @transform_0, window_bounds = array<i64: 1, 4, 2432>}, {transform_indices = @transform_1, window_bounds = array<i64: 1, 3, 32, 12>}, {pipeline_mode = #tpu.pipeline_mode<synchronous>, transform_indices = @transform_2, window_bounds = array<i64: 1, 2048>}, {transform_indices = @transform_3, window_bounds = array<i64: 1, 4, 8, 2048>}]} {
    %c0 = arith.constant 0 : index
    %c0_0 = arith.constant 0 : index
    %c0_1 = arith.constant 0 : index
    %0 = vector.load %arg2[%c0, %c0_0, %c0_1] : memref<1x4x2432xbf16, #tpu.memory_space<vmem>>, vector<1x4x2432xbf16>
    %1 = vector.shape_cast %0 : vector<1x4x2432xbf16> to vector<4x2432xbf16>
    %2 = vector.extract_strided_slice %1 {offsets = [0, 0], sizes = [4, 2048], strides = [1, 1]} : vector<4x2432xbf16> to vector<4x2048xbf16>
    %3 = vector.extract_strided_slice %1 {offsets = [0, 128], sizes = [4, 2048], strides = [1, 1]} : vector<4x2432xbf16> to vector<4x2048xbf16>
    %4 = vector.extract_strided_slice %1 {offsets = [0, 256], sizes = [4, 2048], strides = [1, 1]} : vector<4x2432xbf16> to vector<4x2048xbf16>
    %5 = tpu.concatenate %2, %3, %4 in 0 : vector<4x2048xbf16>, vector<4x2048xbf16>, vector<4x2048xbf16> -> vector<12x2048xbf16>
    %c0_2 = arith.constant 0 : index
    %c0_3 = arith.constant 0 : index
    %c0_4 = arith.constant 0 : index
    %c0_5 = arith.constant 0 : index
    %6 = vector.load %arg3[%c0_2, %c0_3, %c0_4, %c0_5] : memref<1x3x32x12xbf16, #tpu.memory_space<vmem>>, vector<1x1x32x12xbf16>
    %7 = vector.shape_cast %6 : vector<1x1x32x12xbf16> to vector<32x12xbf16>
    %cst = arith.constant dense<0.000000e+00> : vector<32x2048xf32>
    %8 = tpu.matmul %7, %5, %cst {dimension_numbers = #tpu.dot_dimension_numbers<[1], [0], [0], [1], [0, 0, 1, 1], [], []>} : vector<32x12xbf16>, vector<12x2048xbf16>, vector<32x2048xf32> -> vector<32x2048xf32>
    %9 = vector.extract_strided_slice %1 {offsets = [0, 1], sizes = [4, 2048], strides = [1, 1]} : vector<4x2432xbf16> to vector<4x2048xbf16>
    %10 = vector.extract_strided_slice %1 {offsets = [0, 129], sizes = [4, 2048], strides = [1, 1]} : vector<4x2432xbf16> to vector<4x2048xbf16>
    %11 = vector.extract_strided_slice %1 {offsets = [0, 257], sizes = [4, 2048], strides = [1, 1]} : vector<4x2432xbf16> to vector<4x2048xbf16>
    %12 = tpu.concatenate %9, %10, %11 in 0 : vector<4x2048xbf16>, vector<4x2048xbf16>, vector<4x2048xbf16> -> vector<12x2048xbf16>
    %c0_6 = arith.constant 0 : index
    %c1 = arith.constant 1 : index
    %c0_7 = arith.constant 0 : index
    %c0_8 = arith.constant 0 : index
    %13 = vector.load %arg3[%c0_6, %c1, %c0_7, %c0_8] : memref<1x3x32x12xbf16, #tpu.memory_space<vmem>>, vector<1x1x32x12xbf16>
    %14 = vector.shape_cast %13 : vector<1x1x32x12xbf16> to vector<32x12xbf16>
    %cst_9 = arith.constant dense<0.000000e+00> : vector<32x2048xf32>
    %15 = tpu.matmul %14, %12, %cst_9 {dimension_numbers = #tpu.dot_dimension_numbers<[1], [0], [0], [1], [0, 0, 1, 1], [], []>} : vector<32x12xbf16>, vector<12x2048xbf16>, vector<32x2048xf32> -> vector<32x2048xf32>
    %16 = arith.addf %8, %15 : vector<32x2048xf32>
    %17 = vector.extract_strided_slice %1 {offsets = [0, 2], sizes = [4, 2048], strides = [1, 1]} : vector<4x2432xbf16> to vector<4x2048xbf16>
    %18 = vector.extract_strided_slice %1 {offsets = [0, 130], sizes = [4, 2048], strides = [1, 1]} : vector<4x2432xbf16> to vector<4x2048xbf16>
    %19 = vector.extract_strided_slice %1 {offsets = [0, 258], sizes = [4, 2048], strides = [1, 1]} : vector<4x2432xbf16> to vector<4x2048xbf16>
    %20 = tpu.concatenate %17, %18, %19 in 0 : vector<4x2048xbf16>, vector<4x2048xbf16>, vector<4x2048xbf16> -> vector<12x2048xbf16>
    %c0_10 = arith.constant 0 : index
    %c2 = arith.constant 2 : index
    %c0_11 = arith.constant 0 : index
    %c0_12 = arith.constant 0 : index
    %21 = vector.load %arg3[%c0_10, %c2, %c0_11, %c0_12] : memref<1x3x32x12xbf16, #tpu.memory_space<vmem>>, vector<1x1x32x12xbf16>
    %22 = vector.shape_cast %21 : vector<1x1x32x12xbf16> to vector<32x12xbf16>
    %cst_13 = arith.constant dense<0.000000e+00> : vector<32x2048xf32>
    %23 = tpu.matmul %22, %20, %cst_13 {dimension_numbers = #tpu.dot_dimension_numbers<[1], [0], [0], [1], [0, 0, 1, 1], [], []>} : vector<32x12xbf16>, vector<12x2048xbf16>, vector<32x2048xf32> -> vector<32x2048xf32>
    %24 = arith.addf %16, %23 : vector<32x2048xf32>
    %25 = vector.shape_cast %24 : vector<32x2048xf32> to vector<4x8x2048xf32>
    %c0_14 = arith.constant 0 : index
    %c0_15 = arith.constant 0 : index
    %26 = vector.load %arg4[%c0_14, %c0_15] : memref<1x2048xf32, #tpu.memory_space<vmem>>, vector<1x2048xf32>
    %27 = vector.shape_cast %26 : vector<1x2048xf32> to vector<1x1x2048xf32>
    %28 = vector.broadcast %27 : vector<1x1x2048xf32> to vector<4x8x2048xf32>
    %29 = arith.mulf %25, %28 : vector<4x8x2048xf32>
    %cst_16 = arith.constant dense<0.000000e+00> : vector<4x8xf32>
    %30 = vector.multi_reduction <add>, %29, %cst_16 [2] : vector<4x8x2048xf32> to vector<4x8xf32>
    %31 = vector.shape_cast %30 : vector<4x8xf32> to vector<4x8x1xf32>
    %cst_17 = arith.constant dense<0.000000e+00> : vector<8x1xf32>
    %32 = vector.multi_reduction <add>, %31, %cst_17 [0] : vector<4x8x1xf32> to vector<8x1xf32>
    %33 = vector.shape_cast %32 : vector<8x1xf32> to vector<1x8x1xf32>
    %34 = arith.mulf %29, %29 : vector<4x8x2048xf32>
    %cst_18 = arith.constant dense<0.000000e+00> : vector<4x8xf32>
    %35 = vector.multi_reduction <add>, %34, %cst_18 [2] : vector<4x8x2048xf32> to vector<4x8xf32>
    %36 = vector.shape_cast %35 : vector<4x8xf32> to vector<4x8x1xf32>
    %cst_19 = arith.constant dense<0.000000e+00> : vector<8x1xf32>
    %37 = vector.multi_reduction <add>, %36, %cst_19 [0] : vector<4x8x1xf32> to vector<8x1xf32>
    %38 = vector.shape_cast %37 : vector<8x1xf32> to vector<1x8x1xf32>
    %cst_20 = arith.constant 1.024000e+03 : f32
    %39 = vector.broadcast %cst_20 : f32 to vector<1x8x1xf32>
    %40 = arith.divf %33, %39 : vector<1x8x1xf32>
    %cst_21 = arith.constant 1.024000e+03 : f32
    %41 = vector.broadcast %cst_21 : f32 to vector<1x8x1xf32>
    %42 = arith.divf %38, %41 : vector<1x8x1xf32>
    %43 = arith.mulf %40, %40 : vector<1x8x1xf32>
    %44 = arith.subf %42, %43 : vector<1x8x1xf32>
    %cst_22 = arith.constant 0.000000e+00 : f32
    %45 = vector.broadcast %cst_22 : f32 to vector<1x8x1xf32>
    %46 = arith.maximumf %44, %45 : vector<1x8x1xf32>
    %cst_23 = arith.constant 9.99999974E-6 : f32
    %47 = vector.broadcast %cst_23 : f32 to vector<1x8x1xf32>
    %48 = arith.addf %46, %47 : vector<1x8x1xf32>
    %49 = math.rsqrt %48 : vector<1x8x1xf32>
    %50 = vector.broadcast %40 : vector<1x8x1xf32> to vector<4x8x2048xf32>
    %51 = arith.subf %29, %50 : vector<4x8x2048xf32>
    %52 = vector.broadcast %49 : vector<1x8x1xf32> to vector<4x8x2048xf32>
    %53 = arith.mulf %51, %52 : vector<4x8x2048xf32>
    %cst_24 = arith.constant 0.000000e+00 : f32
    %54 = vector.broadcast %cst_24 : f32 to vector<4x8x2048xf32>
    %55 = arith.maximumf %53, %54 : vector<4x8x2048xf32>
    %56 = arith.truncf %55 : vector<4x8x2048xf32> to vector<4x8x2048xbf16>
    %c0_25 = arith.constant 0 : index
    %c0_26 = arith.constant 0 : index
    %c0_27 = arith.constant 0 : index
    %c0_28 = arith.constant 0 : index
    %57 = vector.load %arg5[%c0_25, %c0_26, %c0_27, %c0_28] : memref<1x4x8x2048xbf16, #tpu.memory_space<vmem>>, vector<1x4x8x2048xbf16>
    %58 = vector.shape_cast %57 : vector<1x4x8x2048xbf16> to vector<4x8x2048xbf16>
    %59 = vector.shape_cast %56 : vector<4x8x2048xbf16> to vector<1x4x8x2048xbf16>
    tpu.vector_store %arg5[%c0_25, %c0_26, %c0_27, %c0_28], %59 {strides = array<i32>} : memref<1x4x8x2048xbf16, #tpu.memory_space<vmem>>, vector<1x4x8x2048xbf16>,
    return
  }
  func.func @transform_0(%arg0: i32, %arg1: i32) -> (i32, i32, i32) {
    %c0_i32 = arith.constant 0 : i32
    %c0_i32_0 = arith.constant 0 : i32
    %c0_i32_1 = arith.constant 0 : i32
    return %arg0, %c0_i32, %c0_i32_0 : i32, i32, i32
  }
  func.func @transform_1(%arg0: i32, %arg1: i32) -> (i32, i32, i32, i32) {
    %c0_i32 = arith.constant 0 : i32
    %c0_i32_0 = arith.constant 0 : i32
    %c0_i32_1 = arith.constant 0 : i32
    %c0_i32_2 = arith.constant 0 : i32
    return %arg1, %c0_i32, %c0_i32_0, %c0_i32_1 : i32, i32, i32, i32
  }
  func.func @transform_2(%arg0: i32, %arg1: i32) -> (i32, i32) {
    %c0_i32 = arith.constant 0 : i32
    %c0_i32_0 = arith.constant 0 : i32
    %c0_i32_1 = arith.constant 0 : i32
    return %c0_i32, %c0_i32_0 : i32, i32
  }
  func.func @transform_3(%arg0: i32, %arg1: i32) -> (i32, i32, i32, i32) {
    %c0_i32 = arith.constant 0 : i32
    %c0_i32_0 = arith.constant 0 : i32
    %c0_i32_1 = arith.constant 0 : i32
    return %arg0, %c0_i32, %arg1, %c0_i32_0 : i32, i32, i32, i32
  }
}

</mosaic_0001>

<llo_original>
// kernel: tpu_custom_call.1
$region0: #{tpu_custom_call.1}
  #allocation0 [shape = 'u32[]', space=smem, size = 0x4, offset = 0x4, fixed_abs, tag = 'smem constant byte address 0x4 - core index']
  #allocation1 [shape = 'u32[144,128]{1,0:T(1,128)}', space=vmem, size = 0x12000, scoped, tag = 'internal scratch']
  %s0 = inlined_call_operand.hbm [shape: bf16[2,4,2432], index: 0, kind: input, shape index: {}]
  %s1 = inlined_call_operand.vmem [shape: bf16[1,3,32,12], index: 1, kind: input, shape index: {}]
  %s2 = inlined_call_operand.vmem [shape: f32[1,2048], index: 2, kind: input, shape index: {}]
  %s3 = inlined_call_operand.hbm [shape: bf16[2,4,8,2048], index: 3, kind: output, shape index: {}]
  %s4 = sld [smem:[#allocation0]]
  $region49: #{tpu_custom_call.1} parent=0
    _
  %s6 = ssub.s32 1, %s4
  %s7 = scalar_select 0, %s6, %s4
  $region1: #{tpu_custom_call.1} parent=0
    #allocation2 [shape = 'u8[38912]{0}', space=vmem, size = 0x9800, scoped, tag = 'input window, operand 0']
    #allocation3 [shape = 's32[2]{0}', space=sflag, size = 0x8, scoped, tag = 'scoped memory for tpu_custom_call.1']
    #allocation4 [shape = 's32[2]{0}', space=sflag, size = 0x8, scoped, tag = 'scoped memory for tpu_custom_call.1']
    #allocation5 [shape = 'u8[262144]{0}', space=vmem, size = 0x40000, scoped, tag = 'output window, operand 0']
    %8 = vsyncpa [#allocation3], 0
    %s9 = scalar_lea.sflag [#allocation3], 1
    %10 = vsyncpa %s9, 0
    %11 = vsyncpa [#allocation4], 0
    %s12 = scalar_lea.sflag [#allocation4], 1
    %13 = vsyncpa %s12, 0
    loop: start=0, step=1, limit=4
    $region2: #{tpu_custom_call.1} parent=1 // loop_pre_header
      _
    $region3: #{tpu_custom_call.1} parent=1 // loop_header
      %s15 = sphi 0, %s19
      %p16 = scmp.ge.s32.totalorder %s15, 4
      %s22 = sphi 0, %s34
      %s23 = sphi 0, %s30
      %s24 = sphi 0, %s22
      %s25 = sphi 0, %s23
      %s26 = sphi 0, %s24
      %s27 = sphi 0, %s25
      %s37 = sphi 0, %s39
      %s40 = sphi 0, %s37
      %s41 = sphi 0, %s40
      %s57 = sphi 0, %s41
      %s63 = sphi 0, %s65
      %s66 = sphi 0, %s63
      %s67 = sphi 0, %s66
      %s83 = sphi 0, %s67
      %s87 = sphi 0, %s87
      %s89 = sphi 0, %s87
      %s90 = sphi 0, %s89
      %s104 = sphi 0, %s90
      %s112 = sphi 0, %s114
      %s115 = sphi 0, %s112
      %s116 = sphi 0, %s115
      %s132 = sphi 0, %s116
    $region4: #{tpu_custom_call.1} parent=1 // loop_header_branch
      %18 = sbr.rel (%p16) target = $region8
    $region5: #{tpu_custom_call.1} parent=1 // loop_body
      %s20 = ssub.s32 %s15, 1
      %s21 = ssub.s32 %s15, 2
      %s28 = sadd.s32 1, %s23
      %p29 = scmp.ge.s32.totalorder %s28, 1
      %s30 = scalar_select %p29, 0, %s28
      %s31 = sadd.s32 1, %s22
      %s32 = scalar_select %p29, %s31, %s22
      %p33 = scmp.ge.s32.totalorder %s32, 2
      %s34 = scalar_select %p33, 0, %s32
      %s35 = ssub.s32 %s22, %s34
      %p36 = scmp.eq.s32.totalorder %s35, 0
      %s38 = sadd.s32 %s37, 1
      %s39 = scalar_select %p36, %s37, %s38
      %p42 = pneg %p36
      %p43 = scmp.eq.s32.totalorder %s15, 1
      %p44 = por %p42, %p43
      %p45 = scmp.ne.s32.totalorder %s37, %s40
      %p46 = scmp.eq.s32.totalorder %s15, 0
      %p47 = por %p45, %p46
      %p48 = scmp.ne.s32.totalorder %s37, %s40
      %p49 = scmp.eq.s32.totalorder %s20, 1
      %p50 = por %p48, %p49
      %p51 = scmp.ne.s32.totalorder %s40, %s41
      %p52 = scmp.eq.s32.totalorder %s20, 0
      %p53 = por %p51, %p52
      %p54 = scmp.ne.s32.totalorder %s40, %s41
      %p55 = scmp.eq.s32.totalorder %s21, 1
      %p56 = por %p54, %p55
      %p58 = scmp.ne.s32.totalorder %s41, %s57
      %p59 = scmp.eq.s32.totalorder %s21, 0
      %p60 = por %p58, %p59
      %s61 = ssub.s32 %s23, %s30
      %p62 = scmp.eq.s32.totalorder %s61, 0
      %s64 = sadd.s32 %s63, 1
      %s65 = scalar_select %p62, %s63, %s64
      %p68 = pneg %p62
      %p69 = scmp.eq.s32.totalorder %s15, 1
      %p70 = por %p68, %p69
      %p71 = scmp.ne.s32.totalorder %s63, %s66
      %p72 = scmp.eq.s32.totalorder %s15, 0
      %p73 = por %p71, %p72
      %p74 = scmp.ne.s32.totalorder %s63, %s66
      %p75 = scmp.eq.s32.totalorder %s20, 1
      %p76 = por %p74, %p75
      %p77 = scmp.ne.s32.totalorder %s66, %s67
      %p78 = scmp.eq.s32.totalorder %s20, 0
      %p79 = por %p77, %p78
      %p80 = scmp.ne.s32.totalorder %s66, %s67
      %p81 = scmp.eq.s32.totalorder %s21, 1
      %p82 = por %p80, %p81
      %p84 = scmp.ne.s32.totalorder %s67, %s83
      %p85 = scmp.eq.s32.totalorder %s21, 0
      %p86 = por %p84, %p85
      %s88 = sadd.s32 %s87, 1
      %p91 = scmp.eq.s32.totalorder %s15, 1
      %p92 = scmp.ne.s32.totalorder %s87, %s89
      %p93 = scmp.eq.s32.totalorder %s15, 0
      %p94 = por %p92, %p93
      %p95 = scmp.ne.s32.totalorder %s87, %s89
      %p96 = scmp.eq.s32.totalorder %s20, 1
      %p97 = por %p95, %p96
      %p98 = scmp.ne.s32.totalorder %s89, %s90
      %p99 = scmp.eq.s32.totalorder %s20, 0
      %p100 = por %p98, %p99
      %p101 = scmp.ne.s32.totalorder %s89, %s90
      %p102 = scmp.eq.s32.totalorder %s21, 1
      %p103 = por %p101, %p102
      %p105 = scmp.ne.s32.totalorder %s90, %s104
      %p106 = scmp.eq.s32.totalorder %s21, 0
      %p107 = por %p105, %p106
      %s108 = ssub.s32 %s22, %s34
      %s109 = ssub.s32 %s23, %s30
      %s110 = sor.u32 %s108, %s109
      %p111 = scmp.eq.s32.totalorder %s110, 0
      %s113 = sadd.s32 %s112, 1
      %s114 = scalar_select %p111, %s112, %s113
      %p117 = pneg %p111
      %p118 = scmp.eq.s32.totalorder %s15, 1
      %p119 = por %p117, %p118
      %p120 = scmp.ne.s32.totalorder %s112, %s115
      %p121 = scmp.eq.s32.totalorder %s15, 0
      %p122 = por %p120, %p121
      %p123 = scmp.ne.s32.totalorder %s112, %s115
      %p124 = scmp.eq.s32.totalorder %s20, 1
      %p125 = por %p123, %p124
      %p126 = scmp.ne.s32.totalorder %s115, %s116
      %p127 = scmp.eq.s32.totalorder %s20, 0
      %p128 = por %p126, %p127
      %p129 = scmp.ne.s32.totalorder %s115, %s116
      %p130 = scmp.eq.s32.totalorder %s21, 1
      %p131 = por %p129, %p130
      %p133 = scmp.ne.s32.totalorder %s116, %s132
      %p134 = scmp.eq.s32.totalorder %s21, 0
      %p135 = por %p133, %p134
      %p136 = scmp.le.s32.totalorder 1, %s15
      %p137 = scmp.lt.s32.totalorder %s15, 3
      %p138 = pnand %p136, %p137
      %p139 = pneg %p138
      // Predicated region
      $region9: #{tpu_custom_call.1} parent=5 // pred_check
        _
      $region10: #{tpu_custom_call.1} parent=5 // pred_check_branch
        %141 = sbr.rel (%p138) target = $region12
      $region11: #{tpu_custom_call.1} parent=5 // pred_region
        %s142 = ssub.s32 %s15, 1
        // Predicated region
        $region13: #{tpu_custom_call.1} parent=11 // pred_check
          %p143 = pneg %p79
        $region14: #{tpu_custom_call.1} parent=11 // pred_check_branch
          %145 = sbr.rel (%p143) target = $region16
        $region15: #{tpu_custom_call.1} parent=11 // pred_region
          %p146 = scmp.lt.s32.totalorder %s25, 0
          %s147 = scalar_select %p146, %s25, 0
          %s148 = smul.addr %s147, 12
          %s149 = smul.addr %s148, 4
          %s150 = scalar_lea.vmem %s1, %s149
        $region16: #{tpu_custom_call.1} parent=11 // pred_fallthru
          _
        // Predicated region
        $region17: #{tpu_custom_call.1} parent=11 // pred_check
          %p151 = pneg %p100
        $region18: #{tpu_custom_call.1} parent=11 // pred_check_branch
          %153 = sbr.rel (%p151) target = $region20
        $region19: #{tpu_custom_call.1} parent=11 // pred_region
          _
        $region20: #{tpu_custom_call.1} parent=11 // pred_fallthru
          _
      $region12: #{tpu_custom_call.1} parent=5 // pred_fallthru
        _
      %p154 = scmp.lt.s32.totalorder %s15, 2
      // Predicated region
      $region21: #{tpu_custom_call.1} parent=5 // pred_check
        %p155 = pneg %p154
      $region22: #{tpu_custom_call.1} parent=5 // pred_check_branch
        %157 = sbr.rel (%p155) target = $region24
      $region23: #{tpu_custom_call.1} parent=5 // pred_region
        // Predicated region
        $region25: #{tpu_custom_call.1} parent=23 // pred_check
          %p158 = pneg %p47
        $region26: #{tpu_custom_call.1} parent=23 // pred_check_branch
          %160 = sbr.rel (%p158) target = $region28
        $region27: #{tpu_custom_call.1} parent=23 // pred_region
          %s161 = sand.u32 %s37, 1
          %s162 = scalar_lea.sflag [#allocation3], %s161
          %s163 = sand.u32 %s37, 1
          %s164 = smul.addr %s163, 38
          %s165 = scalar_lea.vmem [#allocation2], %s164
          %s167 = ssub.s32 608, 608
          %168 = vsyncadd %s162, %s167
          %s169 = smul.addr %s22, 19
          %s170 = smul.addr %s169, 32
          %s171 = scalar_lea.hbm %s0, %s170
          %s173 = sshll.u32 %s165, 4
          %s174 = int_to_ptr.vmem [resolvable:$true] %s173
          %176 = dma.hbm_to_vmem [thread:$0]  %s171, 608, %s174, %s162
        $region28: #{tpu_custom_call.1} parent=23 // pred_fallthru
          _
      $region24: #{tpu_custom_call.1} parent=5 // pred_fallthru
        _
      %p177 = scmp.le.s32.totalorder 1, %s15
      %p178 = scmp.lt.s32.totalorder %s15, 3
      %p179 = pnand %p177, %p178
      %p180 = pneg %p179
      // Predicated region
      $region29: #{tpu_custom_call.1} parent=5 // pred_check
        _
      $region30: #{tpu_custom_call.1} parent=5 // pred_check_branch
        %182 = sbr.rel (%p179) target = $region32
      $region31: #{tpu_custom_call.1} parent=5 // pred_region
        %s183 = ssub.s32 %s15, 1
        %s184 = sand.u32 %s40, 1
        %s185 = scalar_lea.sflag [#allocation3], %s184
        %s186 = sand.u32 %s40, 1
        %s187 = smul.addr %s186, 38
        %s188 = scalar_lea.vmem [#allocation2], %s187
        // Predicated region
        $region33: #{tpu_custom_call.1} parent=31 // pred_check
          %p189 = pneg %p53
        $region34: #{tpu_custom_call.1} parent=31 // pred_check_branch
          %191 = sbr.rel (%p189) target = $region36
        $region35: #{tpu_custom_call.1} parent=31 // pred_region
          %192 = dma.done %s185, 608
        $region36: #{tpu_custom_call.1} parent=31 // pred_fallthru
          _
        %s193 = sand.u32 %s40, 1
        %s194 = scalar_lea.sflag [#allocation3], %s193
        %s195 = sand.u32 %s40, 1
        %s196 = smul.addr %s195, 38
        %s197 = scalar_lea.vmem [#allocation2], %s196
        %p198 = pneg %p53
        %p199 = pneg %p50
        %p200 = scmp.lt.s32.totalorder %s25, 0
        %s201 = scalar_select %p200, %s25, 0
        %s202 = smul.addr %s201, 12
        %s203 = smul.addr %s202, 4
        %s204 = scalar_lea.vmem %s1, %s203
        %p205 = pneg %p79
        %p206 = pneg %p76
        %p207 = pneg %p100
        %p208 = pneg %p97
        %p209 = pneg %p128
        %p210 = pneg %p125
        %s211 = sand.u32 %s115, 1
        %s212 = scalar_lea.sflag [#allocation4], %s211
        %s213 = sand.u32 %s115, 1
        %s214 = smul.addr %s213, 256
        %s215 = scalar_lea.vmem [#allocation5], %s214
        %p216 = scmp.lt.s32.totalorder %s25, 0
        %s217 = scalar_select %p216, %s25, 0
        %s218 = smul.addr %s217, 12
        %s219 = smul.addr %s218, 4
        %s220 = scalar_lea.vmem %s1, %s219
        %v222 = vld [vmem:[%s188] sm:$0xff]
        %v223 = vld [vmem:[%s188 + $0x8] sm:$0xff]
        %v224 = vld [vmem:[%s188 + $0x10] sm:$0xff]
        %v225 = vld [vmem:[%s188 + $0x18] sm:$0xff]
        %v226 = vld [vmem:[%s188 + $0x20] sm:$0x3f]
        %v231 = vcombine.high %v222, %v222
        %v233 = vunpack.c.l.s4 1983009808
        %v234 = vunpack.c.0.s8 %v233
        %v235 = vlaneseq
        %v236 = vshrl.u32 %v235, 7
        %v237 = vsub.s32 %v234, %v236
        %v238 = vrot.slane %v222, %v237
        %v240 = vunpack.c.l.s4 1983009808
        %v241 = vunpack.c.0.s8 %v240
        %v242 = vlaneseq
        %v243 = vshrl.u32 %v242, 7
        %v244 = vsub.s32 %v241, %v243
        %v245 = vrot.slane %v231, %v244
        %v246 = vcombine.high %v238, %v238
        %v247 = vcombine.high %v245, %v245
        %v248 = vcombine.high %v223, %v223
        %v250 = vunpack.c.l.s4 1983009808
        %v251 = vunpack.c.0.s8 %v250
        %v252 = vlaneseq
        %v253 = vshrl.u32 %v252, 7
        %v254 = vsub.s32 %v251, %v253
        %v255 = vrot.slane %v223, %v254
        %v257 = vunpack.c.l.s4 1983009808
        %v258 = vunpack.c.0.s8 %v257
        %v259 = vlaneseq
        %v260 = vshrl.u32 %v259, 7
        %v261 = vsub.s32 %v258, %v260
        %v262 = vrot.slane %v248, %v261
        %v263 = vcombine.high %v255, %v255
        %v264 = vcombine.high %v262, %v262
        %v265 = vcombine.high %v224, %v224
        %v267 = vunpack.c.l.s4 1983009808
        %v268 = vunpack.c.0.s8 %v267
        %v269 = vlaneseq
        %v270 = vshrl.u32 %v269, 7
        %v271 = vsub.s32 %v268, %v270
        %v272 = vrot.slane %v224, %v271
        %v274 = vunpack.c.l.s4 1983009808
        %v275 = vunpack.c.0.s8 %v274
        %v276 = vlaneseq
        %v277 = vshrl.u32 %v276, 7
        %v278 = vsub.s32 %v275, %v277
        %v279 = vrot.slane %v265, %v278
        %v280 = vcombine.high %v272, %v272
        %v281 = vcombine.high %v279, %v279
        %v282 = vcombine.high %v225, %v225
        %v284 = vunpack.c.l.s4 1983009808
        %v285 = vunpack.c.0.s8 %v284
        %v286 = vlaneseq
        %v287 = vshrl.u32 %v286, 7
        %v288 = vsub.s32 %v285, %v287
        %v289 = vrot.slane %v225, %v288
        %v291 = vunpack.c.l.s4 1983009808
        %v292 = vunpack.c.0.s8 %v291
        %v293 = vlaneseq
        %v294 = vshrl.u32 %v293, 7
        %v295 = vsub.s32 %v292, %v294
        %v296 = vrot.slane %v282, %v295
        %v297 = vcombine.high %v289, %v289
        %v298 = vcombine.high %v296, %v296
        %v300 = vcombine.low %v222, %v222
        %v302 = vunpack.c.l.s4 1983009808
        %v303 = vunpack.c.0.s8 %v302
        %v304 = vlaneseq
        %v305 = vshrl.u32 %v304, 7
        %v306 = vsub.s32 %v303, %v305
        %v307 = vrot.slane %v300, %v306
        %v308 = vcombine.high %v307, %v307
        %v309 = vcombine.low %v223, %v223
        %v311 = vunpack.c.l.s4 1983009808
        %v312 = vunpack.c.0.s8 %v311
        %v313 = vlaneseq
        %v314 = vshrl.u32 %v313, 7
        %v315 = vsub.s32 %v312, %v314
        %v316 = vrot.slane %v309, %v315
        %v317 = vcombine.high %v316, %v316
        %v318 = vcombine.low %v224, %v224
        %v320 = vunpack.c.l.s4 1983009808
        %v321 = vunpack.c.0.s8 %v320
        %v322 = vlaneseq
        %v323 = vshrl.u32 %v322, 7
        %v324 = vsub.s32 %v321, %v323
        %v325 = vrot.slane %v318, %v324
        %v326 = vcombine.high %v325, %v325
        %v327 = vcombine.low %v225, %v225
        %v329 = vunpack.c.l.s4 1983009808
        %v330 = vunpack.c.0.s8 %v329
        %v331 = vlaneseq
        %v332 = vshrl.u32 %v331, 7
        %v333 = vsub.s32 %v330, %v332
        %v334 = vrot.slane %v327, %v333
        %v335 = vcombine.high %v334, %v334
        %v336 = vcombine.low %v226, %v226
        %v338 = vunpack.c.l.s4 1983009808
        %v339 = vunpack.c.0.s8 %v338
        %v340 = vlaneseq
        %v341 = vshrl.u32 %v340, 7
        %v342 = vsub.s32 %v339, %v341
        %v343 = vrot.slane %v336, %v342
        %v345 = vunpack.c.l.s4 1983009808
        %v346 = vunpack.c.0.s8 %v345
        %v347 = vlaneseq
        %v348 = vshrl.u32 %v347, 7
        %v349 = vsub.s32 %v346, %v348
        %v350 = vrot.slane %v226, %v349
        %v351 = vcombine.low %v245, %v245
        %v352 = vcombine.low %v255, %v255
        %v353 = vcombine.low %v262, %v262
        %v354 = vcombine.low %v272, %v272
        %v355 = vcombine.low %v279, %v279
        %v356 = vcombine.low %v289, %v289
        %v357 = vcombine.low %v296, %v296
        %v358 = vcombine.low %v350, %v350
        %vm359 = vcmask 1041408
        %v362 = vsel %vm359, %v238, %v308
        %v364 = vsel %vm359, %v246, %v238
        %v366 = vsel %vm359, %v245, %v246
        %v369 = vsel %vm359, %v247, %v316
        %v372 = vsel %vm359, %v255, %v317
        %v374 = vsel %vm359, %v263, %v255
        %v376 = vsel %vm359, %v262, %v263
        %v379 = vsel %vm359, %v264, %v325
        %v382 = vsel %vm359, %v272, %v326
        %v384 = vsel %vm359, %v280, %v272
        %v386 = vsel %vm359, %v279, %v280
        %v389 = vsel %vm359, %v281, %v334
        %v392 = vsel %vm359, %v289, %v335
        %v394 = vsel %vm359, %v297, %v289
        %v396 = vsel %vm359, %v296, %v297
        %v399 = vsel %vm359, %v298, %v343
        %vm400 = vcmask 1043456
        %v402 = vsel %vm400, %v362, %v351
        %v403 = vsel %vm400, %v364, %v245
        %v405 = vsel %vm400, %v366, %v352
        %v406 = vsel %vm400, %v369, %v255
        %v408 = vsel %vm400, %v372, %v353
        %v409 = vsel %vm400, %v374, %v262
        %v411 = vsel %vm400, %v376, %v354
        %v412 = vsel %vm400, %v379, %v272
        %v414 = vsel %vm400, %v382, %v355
        %v415 = vsel %vm400, %v384, %v279
        %v417 = vsel %vm400, %v386, %v356
        %v418 = vsel %vm400, %v389, %v289
        %v420 = vsel %vm400, %v392, %v357
        %v421 = vsel %vm400, %v394, %v296
        %v423 = vsel %vm400, %v396, %v358
        %v425 = vsel %vm400, %v399, %v350
        %v426 = vld [vmem:[%s220] sm:$0xf]
        %v427 = vld [vmem:[%s220 + $0x4] sm:$0xf]
        %v428 = vld [vmem:[%s220 + $0x8] sm:$0xf]
        %v429 = vld [vmem:[%s220 + $0xc] sm:$0xf]
        %v430 = vcombine.high %v343, %v343
        %v431 = vcombine.high %v226, %v226
        %v433 = vunpack.c.l.s4 1983009808
        %v434 = vunpack.c.0.s8 %v433
        %v435 = vlaneseq
        %v436 = vshrl.u32 %v435, 7
        %v437 = vsub.s32 %v434, %v436
        %v438 = vrot.slane %v431, %v437
        %v439 = vcombine.low %v438, %v438
        %v441 = vsel %vm359, %v350, %v430
        %v443 = vsel %vm400, %v441, %v439
        %s444 = scalar_lea.vmem %s220, 16
        %v445 = vld [vmem:[%s444] sm:$0xf]
        %v446 = vld [vmem:[%s444 + $0x4] sm:$0xf]
        %v447 = vld [vmem:[%s444 + $0x8] sm:$0xf]
        %v448 = vld [vmem:[%s444 + $0xc] sm:$0xf]
        %v453 = vunpack.c.l.b16 %v445
        %v454 = vunpack.c.l.b16 %v446
        %v455 = vunpack.c.l.b16 %v447
        %v456 = vunpack.c.l.b16 %v448
        %v457 = vpack.c.b16 %v454, %v453
        %v458 = vpack.c.b16 %v456, %v455
        %476 = vrot.lane.b32.xlu0 %v402, 127
        %v477 = vpop.permute.xlu0 %476
        %478 = vrot.lane.b32.xlu0 %v403, 127
        %v479 = vpop.permute.xlu0 %478
        %480 = vrot.lane.b32.xlu0 %v405, 127
        %v481 = vpop.permute.xlu0 %480
        %482 = vrot.lane.b32.xlu0 %v406, 127
        %v483 = vpop.permute.xlu0 %482
        %484 = vrot.lane.b32.xlu0 %v408, 127
        %v485 = vpop.permute.xlu0 %484
        %486 = vrot.lane.b32.xlu0 %v409, 127
        %v487 = vpop.permute.xlu0 %486
        %488 = vrot.lane.b32.xlu0 %v411, 127
        %v489 = vpop.permute.xlu0 %488
        %490 = vrot.lane.b32.xlu0 %v412, 127
        %v491 = vpop.permute.xlu0 %490
        %492 = vrot.lane.b32.xlu0 %v414, 127
        %v493 = vpop.permute.xlu0 %492
        %494 = vrot.lane.b32.xlu0 %v415, 127
        %v495 = vpop.permute.xlu0 %494
        %496 = vrot.lane.b32.xlu0 %v417, 127
        %v497 = vpop.permute.xlu0 %496
        %498 = vrot.lane.b32.xlu0 %v418, 127
        %v499 = vpop.permute.xlu0 %498
        %500 = vrot.lane.b32.xlu0 %v420, 127
        %v501 = vpop.permute.xlu0 %500
        %502 = vrot.lane.b32.xlu0 %v421, 127
        %v503 = vpop.permute.xlu0 %502
        %504 = vrot.lane.b32.xlu0 %v423, 127
        %v505 = vpop.permute.xlu0 %504
        %506 = vrot.lane.b32.xlu0 %v425, 127
        %v507 = vpop.permute.xlu0 %506
        %508 = vrot.lane.b32.xlu0 %v443, 127
        %v509 = vpop.permute.xlu0 %508
        %vm510 = vcmask 1039360
        %v511 = vsel %vm510, %v477, %v479
        %v512 = vsel %vm510, %v479, %v481
        %v513 = vsel %vm510, %v481, %v483
        %v514 = vsel %vm510, %v483, %v485
        %v515 = vsel %vm510, %v485, %v487
        %v516 = vsel %vm510, %v487, %v489
        %v517 = vsel %vm510, %v489, %v491
        %v518 = vsel %vm510, %v491, %v493
        %v519 = vsel %vm510, %v493, %v495
        %v520 = vsel %vm510, %v495, %v497
        %v521 = vsel %vm510, %v497, %v499
        %v522 = vsel %vm510, %v499, %v501
        %v523 = vsel %vm510, %v501, %v503
        %v524 = vsel %vm510, %v503, %v505
        %v525 = vsel %vm510, %v505, %v507
        %v526 = vsel %vm510, %v507, %v509
        %vm527 = vcmask 97280
        %v529 = vsel %vm527, %v457, 0
        %v532 = vsel %vm527, %v458, 0
        %vm534 = vcmask 1045504
        %v536 = vsel %vm534, %v511, 0
        %v539 = vsel %vm534, %v512, 0
        %v542 = vsel %vm534, %v513, 0
        %v545 = vsel %vm534, %v514, 0
        %v548 = vsel %vm534, %v515, 0
        %v551 = vsel %vm534, %v516, 0
        %v554 = vsel %vm534, %v517, 0
        %v557 = vsel %vm534, %v518, 0
        %v560 = vsel %vm534, %v519, 0
        %v563 = vsel %vm534, %v520, 0
        %v566 = vsel %vm534, %v521, 0
        %v569 = vsel %vm534, %v522, 0
        %v572 = vsel %vm534, %v523, 0
        %v575 = vsel %vm534, %v524, 0
        %v578 = vsel %vm534, %v525, 0
        %v581 = vsel %vm534, %v526, 0
        %583 = vmatprep.subr.bf16.mxu0 %v539
        %584 = vmatpush1.bf16.msra.mxu0 %v536
        %585 = vmatprep.subr.bf16.mxu0 0
        %586 = vmatpush1.bf16.msra.mxu0 0
        %587 = vmatprep.subr.bf16.mxu0 0
        %588 = vmatpush1.bf16.msra.mxu0 0
        %589 = vmatprep.subr.bf16.mxu0 0
        %590 = vmatpush1.bf16.msra.mxu0 0
        %591 = vmatprep.subr.bf16.mxu0 0
        %592 = vmatpush1.bf16.msra.mxu0 0
        %593 = vmatprep.subr.bf16.mxu0 0
        %594 = vmatpush1.bf16.msra.mxu0 0
        %595 = vmatprep.subr.bf16.mxu0 0
        %596 = vmatpush1.bf16.msra.mxu0 0
        %597 = vmatprep.subr.bf16.mxu0 0
        %598 = vmatpush1.bf16.msra.mxu0 0
        %599 = vmatprep.subr.bf16.mxu0 0
        %600 = vmatpush1.bf16.msra.mxu0 0
        %601 = vmatprep.subr.bf16.mxu0 0
        %602 = vmatpush1.bf16.msra.mxu0 0
        %603 = vmatprep.subr.bf16.mxu0 0
        %604 = vmatpush1.bf16.msra.mxu0 0
        %605 = vmatprep.subr.bf16.mxu0 0
        %606 = vmatpush1.bf16.msra.mxu0 0
        %607 = vmatprep.subr.bf16.mxu0 0
        %608 = vmatpush1.bf16.msra.mxu0 0
        %609 = vmatprep.subr.bf16.mxu0 0
        %610 = vmatpush1.bf16.msra.mxu0 0
        %611 = vmatprep.subr.bf16.mxu0 0
        %612 = vmatpush1.bf16.msra.mxu0 0
        %613 = vmatprep.subr.bf16.mxu0 0
        %614 = vmatpush1.bf16.msra.mxu0 0
        %615 = vmatprep.mubr.bf16.mxu0 0
        %616 = vmatmul.mubr.bf16.gmra.mrb[0].mxu0 %v529
        %v617 = vpop.f32.mrb[0].mxu0
        %v618 = vadd.f32 0.0, %v617
        %v619 = vpop.f32.mrb[0].mxu0
        %v620 = vadd.f32 0.0, %v619
        %v621 = vpop.f32.mrb[0].mxu0
        %v622 = vadd.f32 0.0, %v621
        %v623 = vpop.f32.mrb[0].mxu0
        %v624 = vadd.f32 0.0, %v623
        %625 = vmatprep.mubr.bf16.mxu0 0
        %626 = vmatmul.mubr.bf16.gmra.mrb[0].mxu0 %v532
        %v627 = vpop.f32.mrb[0].mxu0
        %v628 = vadd.f32 0.0, %v627
        %v629 = vpop.f32.mrb[0].mxu0
        %v630 = vadd.f32 0.0, %v629
        %v631 = vpop.f32.mrb[0].mxu0
        %v632 = vadd.f32 0.0, %v631
        %v633 = vpop.f32.mrb[0].mxu0
        %v634 = vadd.f32 0.0, %v633
        %635 = vdwg.mxu0
        %636 = vmatprep.subr.bf16.mxu0 %v545
        %637 = vmatpush1.bf16.msra.mxu0 %v542
        %638 = vmatprep.subr.bf16.mxu0 0
        %639 = vmatpush1.bf16.msra.mxu0 0
        %640 = vmatprep.subr.bf16.mxu0 0
        %641 = vmatpush1.bf16.msra.mxu0 0
        %642 = vmatprep.subr.bf16.mxu0 0
        %643 = vmatpush1.bf16.msra.mxu0 0
        %644 = vmatprep.subr.bf16.mxu0 0
        %645 = vmatpush1.bf16.msra.mxu0 0
        %646 = vmatprep.subr.bf16.mxu0 0
        %647 = vmatpush1.bf16.msra.mxu0 0
        %648 = vmatprep.subr.bf16.mxu0 0
        %649 = vmatpush1.bf16.msra.mxu0 0
        %650 = vmatprep.subr.bf16.mxu0 0
        %651 = vmatpush1.bf16.msra.mxu0 0
        %652 = vmatprep.subr.bf16.mxu0 0
        %653 = vmatpush1.bf16.msra.mxu0 0
        %654 = vmatprep.subr.bf16.mxu0 0
        %655 = vmatpush1.bf16.msra.mxu0 0
        %656 = vmatprep.subr.bf16.mxu0 0
        %657 = vmatpush1.bf16.msra.mxu0 0
        %658 = vmatprep.subr.bf16.mxu0 0
        %659 = vmatpush1.bf16.msra.mxu0 0
        %660 = vmatprep.subr.bf16.mxu0 0
        %661 = vmatpush1.bf16.msra.mxu0 0
        %662 = vmatprep.subr.bf16.mxu0 0
        %663 = vmatpush1.bf16.msra.mxu0 0
        %664 = vmatprep.subr.bf16.mxu0 0
        %665 = vmatpush1.bf16.msra.mxu0 0
        %666 = vmatprep.subr.bf16.mxu0 0
        %667 = vmatpush1.bf16.msra.mxu0 0
        %668 = vmatprep.mubr.bf16.mxu0 0
        %669 = vmatmul.mubr.bf16.gmra.mrb[0].mxu0 %v529
        %v670 = vpop.f32.mrb[0].mxu0
        %v671 = vadd.f32 0.0, %v670
        %v672 = vpop.f32.mrb[0].mxu0
        %v673 = vadd.f32 0.0, %v672
        %v674 = vpop.f32.mrb[0].mxu0
        %v675 = vadd.f32 0.0, %v674
        %v676 = vpop.f32.mrb[0].mxu0
        %v677 = vadd.f32 0.0, %v676
        %678 = vmatprep.mubr.bf16.mxu0 0
        %679 = vmatmul.mubr.bf16.gmra.mrb[0].mxu0 %v532
        %v680 = vpop.f32.mrb[0].mxu0
        %v681 = vadd.f32 0.0, %v680
        %v682 = vpop.f32.mrb[0].mxu0
        %v683 = vadd.f32 0.0, %v682
        %v684 = vpop.f32.mrb[0].mxu0
        %v685 = vadd.f32 0.0, %v684
        %v686 = vpop.f32.mrb[0].mxu0
        %v687 = vadd.f32 0.0, %v686
        %688 = vdwg.mxu0
        %689 = vmatprep.subr.bf16.mxu0 %v551
        %690 = vmatpush1.bf16.msra.mxu0 %v548
        %691 = vmatprep.subr.bf16.mxu0 0
        %692 = vmatpush1.bf16.msra.mxu0 0
        %693 = vmatprep.subr.bf16.mxu0 0
        %694 = vmatpush1.bf16.msra.mxu0 0
        %695 = vmatprep.subr.bf16.mxu0 0
        %696 = vmatpush1.bf16.msra.mxu0 0
        %697 = vmatprep.subr.bf16.mxu0 0
        %698 = vmatpush1.bf16.msra.mxu0 0
        %699 = vmatprep.subr.bf16.mxu0 0
        %700 = vmatpush1.bf16.msra.mxu0 0
        %701 = vmatprep.subr.bf16.mxu0 0
        %702 = vmatpush1.bf16.msra.mxu0 0
        %703 = vmatprep.subr.bf16.mxu0 0
        %704 = vmatpush1.bf16.msra.mxu0 0
        %705 = vmatprep.subr.bf16.mxu0 0
        %706 = vmatpush1.bf16.msra.mxu0 0
        %707 = vmatprep.subr.bf16.mxu0 0
        %708 = vmatpush1.bf16.msra.mxu0 0
        %709 = vmatprep.subr.bf16.mxu0 0
        %710 = vmatpush1.bf16.msra.mxu0 0
        %711 = vmatprep.subr.bf16.mxu0 0
        %712 = vmatpush1.bf16.msra.mxu0 0
        %713 = vmatprep.subr.bf16.mxu0 0
        %714 = vmatpush1.bf16.msra.mxu0 0
        %715 = vmatprep.subr.bf16.mxu0 0
        %716 = vmatpush1.bf16.msra.mxu0 0
        %717 = vmatprep.subr.bf16.mxu0 0
        %718 = vmatpush1.bf16.msra.mxu0 0
        %719 = vmatprep.subr.bf16.mxu0 0
        %720 = vmatpush1.bf16.msra.mxu0 0
        %721 = vmatprep.mubr.bf16.mxu0 0
        %722 = vmatmul.mubr.bf16.gmra.mrb[0].mxu0 %v529
        %v723 = vpop.f32.mrb[0].mxu0
        %v724 = vadd.f32 0.0, %v723
        %v725 = vpop.f32.mrb[0].mxu0
        %v726 = vadd.f32 0.0, %v725
        %v727 = vpop.f32.mrb[0].mxu0
        %v728 = vadd.f32 0.0, %v727
        %v729 = vpop.f32.mrb[0].mxu0
        %v730 = vadd.f32 0.0, %v729
        %731 = vmatprep.mubr.bf16.mxu0 0
        %732 = vmatmul.mubr.bf16.gmra.mrb[0].mxu0 %v532
        %v733 = vpop.f32.mrb[0].mxu0
        %v734 = vadd.f32 0.0, %v733
        %v735 = vpop.f32.mrb[0].mxu0
        %v736 = vadd.f32 0.0, %v735
        %v737 = vpop.f32.mrb[0].mxu0
        %v738 = vadd.f32 0.0, %v737
        %v739 = vpop.f32.mrb[0].mxu0
        %v740 = vadd.f32 0.0, %v739
        %741 = vdwg.mxu0
        %742 = vmatprep.subr.bf16.mxu0 %v557
        %743 = vmatpush1.bf16.msra.mxu0 %v554
        %744 = vmatprep.subr.bf16.mxu0 0
        %745 = vmatpush1.bf16.msra.mxu0 0
        %746 = vmatprep.subr.bf16.mxu0 0
        %747 = vmatpush1.bf16.msra.mxu0 0
        %748 = vmatprep.subr.bf16.mxu0 0
        %749 = vmatpush1.bf16.msra.mxu0 0
        %750 = vmatprep.subr.bf16.mxu0 0
        %751 = vmatpush1.bf16.msra.mxu0 0
        %752 = vmatprep.subr.bf16.mxu0 0
        %753 = vmatpush1.bf16.msra.mxu0 0
        %754 = vmatprep.subr.bf16.mxu0 0
        %755 = vmatpush1.bf16.msra.mxu0 0
        %756 = vmatprep.subr.bf16.mxu0 0
        %757 = vmatpush1.bf16.msra.mxu0 0
        %758 = vmatprep.subr.bf16.mxu0 0
        %759 = vmatpush1.bf16.msra.mxu0 0
        %760 = vmatprep.subr.bf16.mxu0 0
        %761 = vmatpush1.bf16.msra.mxu0 0
        %762 = vmatprep.subr.bf16.mxu0 0
        %763 = vmatpush1.bf16.msra.mxu0 0
        %764 = vmatprep.subr.bf16.mxu0 0
        %765 = vmatpush1.bf16.msra.mxu0 0
        %766 = vmatprep.subr.bf16.mxu0 0
        %767 = vmatpush1.bf16.msra.mxu0 0
        %768 = vmatprep.subr.bf16.mxu0 0
        %769 = vmatpush1.bf16.msra.mxu0 0
        %770 = vmatprep.subr.bf16.mxu0 0
        %771 = vmatpush1.bf16.msra.mxu0 0
        %772 = vmatprep.subr.bf16.mxu0 0
        %773 = vmatpush1.bf16.msra.mxu0 0
        %774 = vmatprep.mubr.bf16.mxu0 0
        %775 = vmatmul.mubr.bf16.gmra.mrb[0].mxu0 %v529
        %v776 = vpop.f32.mrb[0].mxu0
        %v777 = vadd.f32 0.0, %v776
        %v778 = vpop.f32.mrb[0].mxu0
        %v779 = vadd.f32 0.0, %v778
        %v780 = vpop.f32.mrb[0].mxu0
        %v781 = vadd.f32 0.0, %v780
        %v782 = vpop.f32.mrb[0].mxu0
        %v783 = vadd.f32 0.0, %v782
        %784 = vmatprep.mubr.bf16.mxu0 0
        %785 = vmatmul.mubr.bf16.gmra.mrb[0].mxu0 %v532
        %v786 = vpop.f32.mrb[0].mxu0
        %v787 = vadd.f32 0.0, %v786
        %v788 = vpop.f32.mrb[0].mxu0
        %v789 = vadd.f32 0.0, %v788
        %v790 = vpop.f32.mrb[0].mxu0
        %v791 = vadd.f32 0.0, %v790
        %v792 = vpop.f32.mrb[0].mxu0
        %v793 = vadd.f32 0.0, %v792
        %794 = vdwg.mxu0
        %795 = vmatprep.subr.bf16.mxu0 %v563
        %796 = vmatpush1.bf16.msra.mxu0 %v560
        %797 = vmatprep.subr.bf16.mxu0 0
        %798 = vmatpush1.bf16.msra.mxu0 0
        %799 = vmatprep.subr.bf16.mxu0 0
        %800 = vmatpush1.bf16.msra.mxu0 0
        %801 = vmatprep.subr.bf16.mxu0 0
        %802 = vmatpush1.bf16.msra.mxu0 0
        %803 = vmatprep.subr.bf16.mxu0 0
        %804 = vmatpush1.bf16.msra.mxu0 0
        %805 = vmatprep.subr.bf16.mxu0 0
        %806 = vmatpush1.bf16.msra.mxu0 0
        %807 = vmatprep.subr.bf16.mxu0 0
        %808 = vmatpush1.bf16.msra.mxu0 0
        %809 = vmatprep.subr.bf16.mxu0 0
        %810 = vmatpush1.bf16.msra.mxu0 0
        %811 = vmatprep.subr.bf16.mxu0 0
        %812 = vmatpush1.bf16.msra.mxu0 0
        %813 = vmatprep.subr.bf16.mxu0 0
        %814 = vmatpush1.bf16.msra.mxu0 0
        %815 = vmatprep.subr.bf16.mxu0 0
        %816 = vmatpush1.bf16.msra.mxu0 0
        %817 = vmatprep.subr.bf16.mxu0 0
        %818 = vmatpush1.bf16.msra.mxu0 0
        %819 = vmatprep.subr.bf16.mxu0 0
        %820 = vmatpush1.bf16.msra.mxu0 0
        %821 = vmatprep.subr.bf16.mxu0 0
        %822 = vmatpush1.bf16.msra.mxu0 0
        %823 = vmatprep.subr.bf16.mxu0 0
        %824 = vmatpush1.bf16.msra.mxu0 0
        %825 = vmatprep.subr.bf16.mxu0 0
        %826 = vmatpush1.bf16.msra.mxu0 0
        %827 = vmatprep.mubr.bf16.mxu0 0
        %828 = vmatmul.mubr.bf16.gmra.mrb[0].mxu0 %v529
        %v829 = vpop.f32.mrb[0].mxu0
        %v830 = vadd.f32 0.0, %v829
        %v831 = vpop.f32.mrb[0].mxu0
        %v832 = vadd.f32 0.0, %v831
        %v833 = vpop.f32.mrb[0].mxu0
        %v834 = vadd.f32 0.0, %v833
        %v835 = vpop.f32.mrb[0].mxu0
        %v836 = vadd.f32 0.0, %v835
        %837 = vmatprep.mubr.bf16.mxu0 0
        %838 = vmatmul.mubr.bf16.gmra.mrb[0].mxu0 %v532
        %v839 = vpop.f32.mrb[0].mxu0
        %v840 = vadd.f32 0.0, %v839
        %v841 = vpop.f32.mrb[0].mxu0
        %v842 = vadd.f32 0.0, %v841
        %v843 = vpop.f32.mrb[0].mxu0
        %v844 = vadd.f32 0.0, %v843
        %v845 = vpop.f32.mrb[0].mxu0
        %v846 = vadd.f32 0.0, %v845
        %847 = vdwg.mxu0
        %848 = vmatprep.subr.bf16.mxu0 %v569
        %849 = vmatpush1.bf16.msra.mxu0 %v566
        %850 = vmatprep.subr.bf16.mxu0 0
        %851 = vmatpush1.bf16.msra.mxu0 0
        %852 = vmatprep.subr.bf16.mxu0 0
        %853 = vmatpush1.bf16.msra.mxu0 0
        %854 = vmatprep.subr.bf16.mxu0 0
        %855 = vmatpush1.bf16.msra.mxu0 0
        %856 = vmatprep.subr.bf16.mxu0 0
        %857 = vmatpush1.bf16.msra.mxu0 0
        %858 = vmatprep.subr.bf16.mxu0 0
        %859 = vmatpush1.bf16.msra.mxu0 0
        %860 = vmatprep.subr.bf16.mxu0 0
        %861 = vmatpush1.bf16.msra.mxu0 0
        %862 = vmatprep.subr.bf16.mxu0 0
        %863 = vmatpush1.bf16.msra.mxu0 0
        %864 = vmatprep.subr.bf16.mxu0 0
        %865 = vmatpush1.bf16.msra.mxu0 0
        %866 = vmatprep.subr.bf16.mxu0 0
        %867 = vmatpush1.bf16.msra.mxu0 0
        %868 = vmatprep.subr.bf16.mxu0 0
        %869 = vmatpush1.bf16.msra.mxu0 0
        %870 = vmatprep.subr.bf16.mxu0 0
        %871 = vmatpush1.bf16.msra.mxu0 0
        %872 = vmatprep.subr.bf16.mxu0 0
        %873 = vmatpush1.bf16.msra.mxu0 0
        %874 = vmatprep.subr.bf16.mxu0 0
        %875 = vmatpush1.bf16.msra.mxu0 0
        %876 = vmatprep.subr.bf16.mxu0 0
        %877 = vmatpush1.bf16.msra.mxu0 0
        %878 = vmatprep.subr.bf16.mxu0 0
        %879 = vmatpush1.bf16.msra.mxu0 0
        %880 = vmatprep.mubr.bf16.mxu0 0
        %881 = vmatmul.mubr.bf16.gmra.mrb[0].mxu0 %v529
        %v882 = vpop.f32.mrb[0].mxu0
        %v883 = vadd.f32 0.0, %v882
        %v884 = vpop.f32.mrb[0].mxu0
        %v885 = vadd.f32 0.0, %v884
        %v886 = vpop.f32.mrb[0].mxu0
        %v887 = vadd.f32 0.0, %v886
        %v888 = vpop.f32.mrb[0].mxu0
        %v889 = vadd.f32 0.0, %v888
        %890 = vmatprep.mubr.bf16.mxu0 0
        %891 = vmatmul.mubr.bf16.gmra.mrb[0].mxu0 %v532
        %v892 = vpop.f32.mrb[0].mxu0
        %v893 = vadd.f32 0.0, %v892
        %v894 = vpop.f32.mrb[0].mxu0
        %v895 = vadd.f32 0.0, %v894
        %v896 = vpop.f32.mrb[0].mxu0
        %v897 = vadd.f32 0.0, %v896
        %v898 = vpop.f32.mrb[0].mxu0
        %v899 = vadd.f32 0.0, %v898
        %900 = vdwg.mxu0
        %901 = vmatprep.subr.bf16.mxu0 %v575
        %902 = vmatpush1.bf16.msra.mxu0 %v572
        %903 = vmatprep.subr.bf16.mxu0 0
        %904 = vmatpush1.bf16.msra.mxu0 0
        %905 = vmatprep.subr.bf16.mxu0 0
        %906 = vmatpush1.bf16.msra.mxu0 0
        %907 = vmatprep.subr.bf16.mxu0 0
        %908 = vmatpush1.bf16.msra.mxu0 0
        %909 = vmatprep.subr.bf16.mxu0 0
        %910 = vmatpush1.bf16.msra.mxu0 0
        %911 = vmatprep.subr.bf16.mxu0 0
        %912 = vmatpush1.bf16.msra.mxu0 0
        %913 = vmatprep.subr.bf16.mxu0 0
        %914 = vmatpush1.bf16.msra.mxu0 0
        %915 = vmatprep.subr.bf16.mxu0 0
        %916 = vmatpush1.bf16.msra.mxu0 0
        %917 = vmatprep.subr.bf16.mxu0 0
        %918 = vmatpush1.bf16.msra.mxu0 0
        %919 = vmatprep.subr.bf16.mxu0 0
        %920 = vmatpush1.bf16.msra.mxu0 0
        %921 = vmatprep.subr.bf16.mxu0 0
        %922 = vmatpush1.bf16.msra.mxu0 0
        %923 = vmatprep.subr.bf16.mxu0 0
        %924 = vmatpush1.bf16.msra.mxu0 0
        %925 = vmatprep.subr.bf16.mxu0 0
        %926 = vmatpush1.bf16.msra.mxu0 0
        %927 = vmatprep.subr.bf16.mxu0 0
        %928 = vmatpush1.bf16.msra.mxu0 0
        %929 = vmatprep.subr.bf16.mxu0 0
        %930 = vmatpush1.bf16.msra.mxu0 0
        %931 = vmatprep.subr.bf16.mxu0 0
        %932 = vmatpush1.bf16.msra.mxu0 0
        %933 = vmatprep.mubr.bf16.mxu0 0
        %934 = vmatmul.mubr.bf16.gmra.mrb[0].mxu0 %v529
        %v935 = vpop.f32.mrb[0].mxu0
        %v936 = vadd.f32 0.0, %v935
        %v937 = vpop.f32.mrb[0].mxu0
        %v938 = vadd.f32 0.0, %v937
        %v939 = vpop.f32.mrb[0].mxu0
        %v940 = vadd.f32 0.0, %v939
        %v941 = vpop.f32.mrb[0].mxu0
        %v942 = vadd.f32 0.0, %v941
        %943 = vmatprep.mubr.bf16.mxu0 0
        %944 = vmatmul.mubr.bf16.gmra.mrb[0].mxu0 %v532
        %v945 = vpop.f32.mrb[0].mxu0
        %v946 = vadd.f32 0.0, %v945
        %v947 = vpop.f32.mrb[0].mxu0
        %v948 = vadd.f32 0.0, %v947
        %v949 = vpop.f32.mrb[0].mxu0
        %v950 = vadd.f32 0.0, %v949
        %v951 = vpop.f32.mrb[0].mxu0
        %v952 = vadd.f32 0.0, %v951
        %953 = vdwg.mxu0
        %954 = vmatprep.subr.bf16.mxu0 %v581
        %955 = vmatpush1.bf16.msra.mxu0 %v578
        %956 = vmatprep.subr.bf16.mxu0 0
        %957 = vmatpush1.bf16.msra.mxu0 0
        %958 = vmatprep.subr.bf16.mxu0 0
        %959 = vmatpush1.bf16.msra.mxu0 0
        %960 = vmatprep.subr.bf16.mxu0 0
        %961 = vmatpush1.bf16.msra.mxu0 0
        %962 = vmatprep.subr.bf16.mxu0 0
        %963 = vmatpush1.bf16.msra.mxu0 0
        %964 = vmatprep.subr.bf16.mxu0 0
        %965 = vmatpush1.bf16.msra.mxu0 0
        %966 = vmatprep.subr.bf16.mxu0 0
        %967 = vmatpush1.bf16.msra.mxu0 0
        %968 = vmatprep.subr.bf16.mxu0 0
        %969 = vmatpush1.bf16.msra.mxu0 0
        %970 = vmatprep.subr.bf16.mxu0 0
        %971 = vmatpush1.bf16.msra.mxu0 0
        %972 = vmatprep.subr.bf16.mxu0 0
        %973 = vmatpush1.bf16.msra.mxu0 0
        %974 = vmatprep.subr.bf16.mxu0 0
        %975 = vmatpush1.bf16.msra.mxu0 0
        %976 = vmatprep.subr.bf16.mxu0 0
        %977 = vmatpush1.bf16.msra.mxu0 0
        %978 = vmatprep.subr.bf16.mxu0 0
        %979 = vmatpush1.bf16.msra.mxu0 0
        %980 = vmatprep.subr.bf16.mxu0 0
        %981 = vmatpush1.bf16.msra.mxu0 0
        %982 = vmatprep.subr.bf16.mxu0 0
        %983 = vmatpush1.bf16.msra.mxu0 0
        %984 = vmatprep.subr.bf16.mxu0 0
        %985 = vmatpush1.bf16.msra.mxu0 0
        %986 = vmatprep.mubr.bf16.mxu0 0
        %987 = vmatmul.mubr.bf16.gmra.mrb[0].mxu0 %v529
        %v988 = vpop.f32.mrb[0].mxu0
        %v989 = vadd.f32 0.0, %v988
        %v990 = vpop.f32.mrb[0].mxu0
        %v991 = vadd.f32 0.0, %v990
        %v992 = vpop.f32.mrb[0].mxu0
        %v993 = vadd.f32 0.0, %v992
        %v994 = vpop.f32.mrb[0].mxu0
        %v995 = vadd.f32 0.0, %v994
        %996 = vmatprep.mubr.bf16.mxu0 0
        %997 = vmatmul.mubr.bf16.gmra.mrb[0].mxu0 %v532
        %v998 = vpop.f32.mrb[0].mxu0
        %v999 = vadd.f32 0.0, %v998
        %v1000 = vpop.f32.mrb[0].mxu0
        %v1001 = vadd.f32 0.0, %v1000
        %v1002 = vpop.f32.mrb[0].mxu0
        %v1003 = vadd.f32 0.0, %v1002
        %v1004 = vpop.f32.mrb[0].mxu0
        %v1005 = vadd.f32 0.0, %v1004
        %1006 = vdwg.mxu0
        %v1011 = vunpack.c.l.b16 %v426
        %v1012 = vunpack.c.l.b16 %v427
        %v1013 = vunpack.c.l.b16 %v428
        %v1014 = vunpack.c.l.b16 %v429
        %v1015 = vpack.c.b16 %v1012, %v1011
        %v1016 = vpack.c.b16 %v1014, %v1013
        %v1018 = vsel %vm527, %v1015, 0
        %v1021 = vsel %vm527, %v1016, 0
        %v1023 = vsel %vm534, %v402, 0
        %v1025 = vsel %vm534, %v403, 0
        %v1027 = vsel %vm534, %v405, 0
        %v1029 = vsel %vm534, %v406, 0
        %v1031 = vsel %vm534, %v408, 0
        %v1033 = vsel %vm534, %v409, 0
        %v1035 = vsel %vm534, %v411, 0
        %v1037 = vsel %vm534, %v412, 0
        %v1039 = vsel %vm534, %v414, 0
        %v1041 = vsel %vm534, %v415, 0
        %v1043 = vsel %vm534, %v417, 0
        %v1045 = vsel %vm534, %v418, 0
        %v1047 = vsel %vm534, %v420, 0
        %v1049 = vsel %vm534, %v421, 0
        %v1051 = vsel %vm534, %v423, 0
        %v1053 = vsel %vm534, %v425, 0
        %1055 = vmatprep.subr.bf16.mxu0 %v1025
        %1056 = vmatpush1.bf16.msra.mxu0 %v1023
        %1057 = vmatprep.subr.bf16.mxu0 0
        %1058 = vmatpush1.bf16.msra.mxu0 0
        %1059 = vmatprep.subr.bf16.mxu0 0
        %1060 = vmatpush1.bf16.msra.mxu0 0
        %1061 = vmatprep.subr.bf16.mxu0 0
        %1062 = vmatpush1.bf16.msra.mxu0 0
        %1063 = vmatprep.subr.bf16.mxu0 0
        %1064 = vmatpush1.bf16.msra.mxu0 0
        %1065 = vmatprep.subr.bf16.mxu0 0
        %1066 = vmatpush1.bf16.msra.mxu0 0
        %1067 = vmatprep.subr.bf16.mxu0 0
        %1068 = vmatpush1.bf16.msra.mxu0 0
        %1069 = vmatprep.subr.bf16.mxu0 0
        %1070 = vmatpush1.bf16.msra.mxu0 0
        %1071 = vmatprep.subr.bf16.mxu0 0
        %1072 = vmatpush1.bf16.msra.mxu0 0
        %1073 = vmatprep.subr.bf16.mxu0 0
        %1074 = vmatpush1.bf16.msra.mxu0 0
        %1075 = vmatprep.subr.bf16.mxu0 0
        %1076 = vmatpush1.bf16.msra.mxu0 0
        %1077 = vmatprep.subr.bf16.mxu0 0
        %1078 = vmatpush1.bf16.msra.mxu0 0
        %1079 = vmatprep.subr.bf16.mxu0 0
        %1080 = vmatpush1.bf16.msra.mxu0 0
        %1081 = vmatprep.subr.bf16.mxu0 0
        %1082 = vmatpush1.bf16.msra.mxu0 0
        %1083 = vmatprep.subr.bf16.mxu0 0
        %1084 = vmatpush1.bf16.msra.mxu0 0
        %1085 = vmatprep.subr.bf16.mxu0 0
        %1086 = vmatpush1.bf16.msra.mxu0 0
        %1087 = vmatprep.mubr.bf16.mxu0 0
        %1088 = vmatmul.mubr.bf16.gmra.mrb[0].mxu0 %v1018
        %v1089 = vpop.f32.mrb[0].mxu0
        %v1090 = vadd.f32 %v618, %v1089
        %v1091 = vpop.f32.mrb[0].mxu0
        %v1092 = vadd.f32 %v620, %v1091
        %v1093 = vpop.f32.mrb[0].mxu0
        %v1094 = vadd.f32 %v622, %v1093
        %v1095 = vpop.f32.mrb[0].mxu0
        %v1096 = vadd.f32 %v624, %v1095
        %1097 = vmatprep.mubr.bf16.mxu0 0
        %1098 = vmatmul.mubr.bf16.gmra.mrb[0].mxu0 %v1021
        %v1099 = vpop.f32.mrb[0].mxu0
        %v1100 = vadd.f32 %v628, %v1099
        %v1101 = vpop.f32.mrb[0].mxu0
        %v1102 = vadd.f32 %v630, %v1101
        %v1103 = vpop.f32.mrb[0].mxu0
        %v1104 = vadd.f32 %v632, %v1103
        %v1105 = vpop.f32.mrb[0].mxu0
        %v1106 = vadd.f32 %v634, %v1105
        %1107 = vdwg.mxu0
        %1108 = vmatprep.subr.bf16.mxu0 %v1029
        %1109 = vmatpush1.bf16.msra.mxu0 %v1027
        %1110 = vmatprep.subr.bf16.mxu0 0
        %1111 = vmatpush1.bf16.msra.mxu0 0
        %1112 = vmatprep.subr.bf16.mxu0 0
        %1113 = vmatpush1.bf16.msra.mxu0 0
        %1114 = vmatprep.subr.bf16.mxu0 0
        %1115 = vmatpush1.bf16.msra.mxu0 0
        %1116 = vmatprep.subr.bf16.mxu0 0
        %1117 = vmatpush1.bf16.msra.mxu0 0
        %1118 = vmatprep.subr.bf16.mxu0 0
        %1119 = vmatpush1.bf16.msra.mxu0 0
        %1120 = vmatprep.subr.bf16.mxu0 0
        %1121 = vmatpush1.bf16.msra.mxu0 0
        %1122 = vmatprep.subr.bf16.mxu0 0
        %1123 = vmatpush1.bf16.msra.mxu0 0
        %1124 = vmatprep.subr.bf16.mxu0 0
        %1125 = vmatpush1.bf16.msra.mxu0 0
        %1126 = vmatprep.subr.bf16.mxu0 0
        %1127 = vmatpush1.bf16.msra.mxu0 0
        %1128 = vmatprep.subr.bf16.mxu0 0
        %1129 = vmatpush1.bf16.msra.mxu0 0
        %1130 = vmatprep.subr.bf16.mxu0 0
        %1131 = vmatpush1.bf16.msra.mxu0 0
        %1132 = vmatprep.subr.bf16.mxu0 0
        %1133 = vmatpush1.bf16.msra.mxu0 0
        %1134 = vmatprep.subr.bf16.mxu0 0
        %1135 = vmatpush1.bf16.msra.mxu0 0
        %1136 = vmatprep.subr.bf16.mxu0 0
        %1137 = vmatpush1.bf16.msra.mxu0 0
        %1138 = vmatprep.subr.bf16.mxu0 0
        %1139 = vmatpush1.bf16.msra.mxu0 0
        %1140 = vmatprep.mubr.bf16.mxu0 0
        %1141 = vmatmul.mubr.bf16.gmra.mrb[0].mxu0 %v1018
        %v1142 = vpop.f32.mrb[0].mxu0
        %v1143 = vadd.f32 %v671, %v1142
        %v1144 = vpop.f32.mrb[0].mxu0
        %v1145 = vadd.f32 %v673, %v1144
        %v1146 = vpop.f32.mrb[0].mxu0
        %v1147 = vadd.f32 %v675, %v1146
        %v1148 = vpop.f32.mrb[0].mxu0
        %v1149 = vadd.f32 %v677, %v1148
        %1150 = vmatprep.mubr.bf16.mxu0 0
        %1151 = vmatmul.mubr.bf16.gmra.mrb[0].mxu0 %v1021
        %v1152 = vpop.f32.mrb[0].mxu0
        %v1153 = vadd.f32 %v681, %v1152
        %v1154 = vpop.f32.mrb[0].mxu0
        %v1155 = vadd.f32 %v683, %v1154
        %v1156 = vpop.f32.mrb[0].mxu0
        %v1157 = vadd.f32 %v685, %v1156
        %v1158 = vpop.f32.mrb[0].mxu0
        %v1159 = vadd.f32 %v687, %v1158
        %1160 = vdwg.mxu0
        %1161 = vmatprep.subr.bf16.mxu0 %v1033
        %1162 = vmatpush1.bf16.msra.mxu0 %v1031
        %1163 = vmatprep.subr.bf16.mxu0 0
        %1164 = vmatpush1.bf16.msra.mxu0 0
        %1165 = vmatprep.subr.bf16.mxu0 0
        %1166 = vmatpush1.bf16.msra.mxu0 0
        %1167 = vmatprep.subr.bf16.mxu0 0
        %1168 = vmatpush1.bf16.msra.mxu0 0
        %1169 = vmatprep.subr.bf16.mxu0 0
        %1170 = vmatpush1.bf16.msra.mxu0 0
        %1171 = vmatprep.subr.bf16.mxu0 0
        %1172 = vmatpush1.bf16.msra.mxu0 0
        %1173 = vmatprep.subr.bf16.mxu0 0
        %1174 = vmatpush1.bf16.msra.mxu0 0
        %1175 = vmatprep.subr.bf16.mxu0 0
        %1176 = vmatpush1.bf16.msra.mxu0 0
        %1177 = vmatprep.subr.bf16.mxu0 0
        %1178 = vmatpush1.bf16.msra.mxu0 0
        %1179 = vmatprep.subr.bf16.mxu0 0
        %1180 = vmatpush1.bf16.msra.mxu0 0
        %1181 = vmatprep.subr.bf16.mxu0 0
        %1182 = vmatpush1.bf16.msra.mxu0 0
        %1183 = vmatprep.subr.bf16.mxu0 0
        %1184 = vmatpush1.bf16.msra.mxu0 0
        %1185 = vmatprep.subr.bf16.mxu0 0
        %1186 = vmatpush1.bf16.msra.mxu0 0
        %1187 = vmatprep.subr.bf16.mxu0 0
        %1188 = vmatpush1.bf16.msra.mxu0 0
        %1189 = vmatprep.subr.bf16.mxu0 0
        %1190 = vmatpush1.bf16.msra.mxu0 0
        %1191 = vmatprep.subr.bf16.mxu0 0
        %1192 = vmatpush1.bf16.msra.mxu0 0
        %1193 = vmatprep.mubr.bf16.mxu0 0
        %1194 = vmatmul.mubr.bf16.gmra.mrb[0].mxu0 %v1018
        %v1195 = vpop.f32.mrb[0].mxu0
        %v1196 = vadd.f32 %v724, %v1195
        %v1197 = vpop.f32.mrb[0].mxu0
        %v1198 = vadd.f32 %v726, %v1197
        %v1199 = vpop.f32.mrb[0].mxu0
        %v1200 = vadd.f32 %v728, %v1199
        %v1201 = vpop.f32.mrb[0].mxu0
        %v1202 = vadd.f32 %v730, %v1201
        %1203 = vmatprep.mubr.bf16.mxu0 0
        %1204 = vmatmul.mubr.bf16.gmra.mrb[0].mxu0 %v1021
        %v1205 = vpop.f32.mrb[0].mxu0
        %v1206 = vadd.f32 %v734, %v1205
        %v1207 = vpop.f32.mrb[0].mxu0
        %v1208 = vadd.f32 %v736, %v1207
        %v1209 = vpop.f32.mrb[0].mxu0
        %v1210 = vadd.f32 %v738, %v1209
        %v1211 = vpop.f32.mrb[0].mxu0
        %v1212 = vadd.f32 %v740, %v1211
        %1213 = vdwg.mxu0
        %1214 = vmatprep.subr.bf16.mxu0 %v1037
        %1215 = vmatpush1.bf16.msra.mxu0 %v1035
        %1216 = vmatprep.subr.bf16.mxu0 0
        %1217 = vmatpush1.bf16.msra.mxu0 0
        %1218 = vmatprep.subr.bf16.mxu0 0
        %1219 = vmatpush1.bf16.msra.mxu0 0
        %1220 = vmatprep.subr.bf16.mxu0 0
        %1221 = vmatpush1.bf16.msra.mxu0 0
        %1222 = vmatprep.subr.bf16.mxu0 0
        %1223 = vmatpush1.bf16.msra.mxu0 0
        %1224 = vmatprep.subr.bf16.mxu0 0
        %1225 = vmatpush1.bf16.msra.mxu0 0
        %1226 = vmatprep.subr.bf16.mxu0 0
        %1227 = vmatpush1.bf16.msra.mxu0 0
        %1228 = vmatprep.subr.bf16.mxu0 0
        %1229 = vmatpush1.bf16.msra.mxu0 0
        %1230 = vmatprep.subr.bf16.mxu0 0
        %1231 = vmatpush1.bf16.msra.mxu0 0
        %1232 = vmatprep.subr.bf16.mxu0 0
        %1233 = vmatpush1.bf16.msra.mxu0 0
        %1234 = vmatprep.subr.bf16.mxu0 0
        %1235 = vmatpush1.bf16.msra.mxu0 0
        %1236 = vmatprep.subr.bf16.mxu0 0
        %1237 = vmatpush1.bf16.msra.mxu0 0
        %1238 = vmatprep.subr.bf16.mxu0 0
        %1239 = vmatpush1.bf16.msra.mxu0 0
        %1240 = vmatprep.subr.bf16.mxu0 0
        %1241 = vmatpush1.bf16.msra.mxu0 0
        %1242 = vmatprep.subr.bf16.mxu0 0
        %1243 = vmatpush1.bf16.msra.mxu0 0
        %1244 = vmatprep.subr.bf16.mxu0 0
        %1245 = vmatpush1.bf16.msra.mxu0 0
        %1246 = vmatprep.mubr.bf16.mxu0 0
        %1247 = vmatmul.mubr.bf16.gmra.mrb[0].mxu0 %v1018
        %v1248 = vpop.f32.mrb[0].mxu0
        %v1249 = vadd.f32 %v777, %v1248
        %v1250 = vpop.f32.mrb[0].mxu0
        %v1251 = vadd.f32 %v779, %v1250
        %v1252 = vpop.f32.mrb[0].mxu0
        %v1253 = vadd.f32 %v781, %v1252
        %v1254 = vpop.f32.mrb[0].mxu0
        %v1255 = vadd.f32 %v783, %v1254
        %1256 = vmatprep.mubr.bf16.mxu0 0
        %1257 = vmatmul.mubr.bf16.gmra.mrb[0].mxu0 %v1021
        %v1258 = vpop.f32.mrb[0].mxu0
        %v1259 = vadd.f32 %v787, %v1258
        %v1260 = vpop.f32.mrb[0].mxu0
        %v1261 = vadd.f32 %v789, %v1260
        %v1262 = vpop.f32.mrb[0].mxu0
        %v1263 = vadd.f32 %v791, %v1262
        %v1264 = vpop.f32.mrb[0].mxu0
        %v1265 = vadd.f32 %v793, %v1264
        %1266 = vdwg.mxu0
        %1267 = vmatprep.subr.bf16.mxu0 %v1041
        %1268 = vmatpush1.bf16.msra.mxu0 %v1039
        %1269 = vmatprep.subr.bf16.mxu0 0
        %1270 = vmatpush1.bf16.msra.mxu0 0
        %1271 = vmatprep.subr.bf16.mxu0 0
        %1272 = vmatpush1.bf16.msra.mxu0 0
        %1273 = vmatprep.subr.bf16.mxu0 0
        %1274 = vmatpush1.bf16.msra.mxu0 0
        %1275 = vmatprep.subr.bf16.mxu0 0
        %1276 = vmatpush1.bf16.msra.mxu0 0
        %1277 = vmatprep.subr.bf16.mxu0 0
        %1278 = vmatpush1.bf16.msra.mxu0 0
        %1279 = vmatprep.subr.bf16.mxu0 0
        %1280 = vmatpush1.bf16.msra.mxu0 0
        %1281 = vmatprep.subr.bf16.mxu0 0
        %1282 = vmatpush1.bf16.msra.mxu0 0
        %1283 = vmatprep.subr.bf16.mxu0 0
        %1284 = vmatpush1.bf16.msra.mxu0 0
        %1285 = vmatprep.subr.bf16.mxu0 0
        %1286 = vmatpush1.bf16.msra.mxu0 0
        %1287 = vmatprep.subr.bf16.mxu0 0
        %1288 = vmatpush1.bf16.msra.mxu0 0
        %1289 = vmatprep.subr.bf16.mxu0 0
        %1290 = vmatpush1.bf16.msra.mxu0 0
        %1291 = vmatprep.subr.bf16.mxu0 0
        %1292 = vmatpush1.bf16.msra.mxu0 0
        %1293 = vmatprep.subr.bf16.mxu0 0
        %1294 = vmatpush1.bf16.msra.mxu0 0
        %1295 = vmatprep.subr.bf16.mxu0 0
        %1296 = vmatpush1.bf16.msra.mxu0 0
        %1297 = vmatprep.subr.bf16.mxu0 0
        %1298 = vmatpush1.bf16.msra.mxu0 0
        %1299 = vmatprep.mubr.bf16.mxu0 0
        %1300 = vmatmul.mubr.bf16.gmra.mrb[0].mxu0 %v1018
        %v1301 = vpop.f32.mrb[0].mxu0
        %v1302 = vadd.f32 %v830, %v1301
        %v1303 = vpop.f32.mrb[0].mxu0
        %v1304 = vadd.f32 %v832, %v1303
        %v1305 = vpop.f32.mrb[0].mxu0
        %v1306 = vadd.f32 %v834, %v1305
        %v1307 = vpop.f32.mrb[0].mxu0
        %v1308 = vadd.f32 %v836, %v1307
        %1309 = vmatprep.mubr.bf16.mxu0 0
        %1310 = vmatmul.mubr.bf16.gmra.mrb[0].mxu0 %v1021
        %v1311 = vpop.f32.mrb[0].mxu0
        %v1312 = vadd.f32 %v840, %v1311
        %v1313 = vpop.f32.mrb[0].mxu0
        %v1314 = vadd.f32 %v842, %v1313
        %v1315 = vpop.f32.mrb[0].mxu0
        %v1316 = vadd.f32 %v844, %v1315
        %v1317 = vpop.f32.mrb[0].mxu0
        %v1318 = vadd.f32 %v846, %v1317
        %1319 = vdwg.mxu0
        %1320 = vmatprep.subr.bf16.mxu0 %v1045
        %1321 = vmatpush1.bf16.msra.mxu0 %v1043
        %1322 = vmatprep.subr.bf16.mxu0 0
        %1323 = vmatpush1.bf16.msra.mxu0 0
        %1324 = vmatprep.subr.bf16.mxu0 0
        %1325 = vmatpush1.bf16.msra.mxu0 0
        %1326 = vmatprep.subr.bf16.mxu0 0
        %1327 = vmatpush1.bf16.msra.mxu0 0
        %1328 = vmatprep.subr.bf16.mxu0 0
        %1329 = vmatpush1.bf16.msra.mxu0 0
        %1330 = vmatprep.subr.bf16.mxu0 0
        %1331 = vmatpush1.bf16.msra.mxu0 0
        %1332 = vmatprep.subr.bf16.mxu0 0
        %1333 = vmatpush1.bf16.msra.mxu0 0
        %1334 = vmatprep.subr.bf16.mxu0 0
        %1335 = vmatpush1.bf16.msra.mxu0 0
        %1336 = vmatprep.subr.bf16.mxu0 0
        %1337 = vmatpush1.bf16.msra.mxu0 0
        %1338 = vmatprep.subr.bf16.mxu0 0
        %1339 = vmatpush1.bf16.msra.mxu0 0
        %1340 = vmatprep.subr.bf16.mxu0 0
        %1341 = vmatpush1.bf16.msra.mxu0 0
        %1342 = vmatprep.subr.bf16.mxu0 0
        %1343 = vmatpush1.bf16.msra.mxu0 0
        %1344 = vmatprep.subr.bf16.mxu0 0
        %1345 = vmatpush1.bf16.msra.mxu0 0
        %1346 = vmatprep.subr.bf16.mxu0 0
        %1347 = vmatpush1.bf16.msra.mxu0 0
        %1348 = vmatprep.subr.bf16.mxu0 0
        %1349 = vmatpush1.bf16.msra.mxu0 0
        %1350 = vmatprep.subr.bf16.mxu0 0
        %1351 = vmatpush1.bf16.msra.mxu0 0
        %1352 = vmatprep.mubr.bf16.mxu0 0
        %1353 = vmatmul.mubr.bf16.gmra.mrb[0].mxu0 %v1018
        %v1354 = vpop.f32.mrb[0].mxu0
        %v1355 = vadd.f32 %v883, %v1354
        %v1356 = vpop.f32.mrb[0].mxu0
        %v1357 = vadd.f32 %v885, %v1356
        %v1358 = vpop.f32.mrb[0].mxu0
        %v1359 = vadd.f32 %v887, %v1358
        %v1360 = vpop.f32.mrb[0].mxu0
        %v1361 = vadd.f32 %v889, %v1360
        %1362 = vmatprep.mubr.bf16.mxu0 0
        %1363 = vmatmul.mubr.bf16.gmra.mrb[0].mxu0 %v1021
        %v1364 = vpop.f32.mrb[0].mxu0
        %v1365 = vadd.f32 %v893, %v1364
        %v1366 = vpop.f32.mrb[0].mxu0
        %v1367 = vadd.f32 %v895, %v1366
        %v1368 = vpop.f32.mrb[0].mxu0
        %v1369 = vadd.f32 %v897, %v1368
        %v1370 = vpop.f32.mrb[0].mxu0
        %v1371 = vadd.f32 %v899, %v1370
        %1372 = vdwg.mxu0
        %1373 = vmatprep.subr.bf16.mxu0 %v1049
        %1374 = vmatpush1.bf16.msra.mxu0 %v1047
        %1375 = vmatprep.subr.bf16.mxu0 0
        %1376 = vmatpush1.bf16.msra.mxu0 0
        %1377 = vmatprep.subr.bf16.mxu0 0
        %1378 = vmatpush1.bf16.msra.mxu0 0
        %1379 = vmatprep.subr.bf16.mxu0 0
        %1380 = vmatpush1.bf16.msra.mxu0 0
        %1381 = vmatprep.subr.bf16.mxu0 0
        %1382 = vmatpush1.bf16.msra.mxu0 0
        %1383 = vmatprep.subr.bf16.mxu0 0
        %1384 = vmatpush1.bf16.msra.mxu0 0
        %1385 = vmatprep.subr.bf16.mxu0 0
        %1386 = vmatpush1.bf16.msra.mxu0 0
        %1387 = vmatprep.subr.bf16.mxu0 0
        %1388 = vmatpush1.bf16.msra.mxu0 0
        %1389 = vmatprep.subr.bf16.mxu0 0
        %1390 = vmatpush1.bf16.msra.mxu0 0
        %1391 = vmatprep.subr.bf16.mxu0 0
        %1392 = vmatpush1.bf16.msra.mxu0 0
        %1393 = vmatprep.subr.bf16.mxu0 0
        %1394 = vmatpush1.bf16.msra.mxu0 0
        %1395 = vmatprep.subr.bf16.mxu0 0
        %1396 = vmatpush1.bf16.msra.mxu0 0
        %1397 = vmatprep.subr.bf16.mxu0 0
        %1398 = vmatpush1.bf16.msra.mxu0 0
        %1399 = vmatprep.subr.bf16.mxu0 0
        %1400 = vmatpush1.bf16.msra.mxu0 0
        %1401 = vmatprep.subr.bf16.mxu0 0
        %1402 = vmatpush1.bf16.msra.mxu0 0
        %1403 = vmatprep.subr.bf16.mxu0 0
        %1404 = vmatpush1.bf16.msra.mxu0 0
        %1405 = vmatprep.mubr.bf16.mxu0 0
        %1406 = vmatmul.mubr.bf16.gmra.mrb[0].mxu0 %v1018
        %v1407 = vpop.f32.mrb[0].mxu0
        %v1408 = vadd.f32 %v936, %v1407
        %v1409 = vpop.f32.mrb[0].mxu0
        %v1410 = vadd.f32 %v938, %v1409
        %v1411 = vpop.f32.mrb[0].mxu0
        %v1412 = vadd.f32 %v940, %v1411
        %v1413 = vpop.f32.mrb[0].mxu0
        %v1414 = vadd.f32 %v942, %v1413
        %1415 = vmatprep.mubr.bf16.mxu0 0
        %1416 = vmatmul.mubr.bf16.gmra.mrb[0].mxu0 %v1021
        %v1417 = vpop.f32.mrb[0].mxu0
        %v1418 = vadd.f32 %v946, %v1417
        %v1419 = vpop.f32.mrb[0].mxu0
        %v1420 = vadd.f32 %v948, %v1419
        %v1421 = vpop.f32.mrb[0].mxu0
        %v1422 = vadd.f32 %v950, %v1421
        %v1423 = vpop.f32.mrb[0].mxu0
        %v1424 = vadd.f32 %v952, %v1423
        %1425 = vdwg.mxu0
        %1426 = vmatprep.subr.bf16.mxu0 %v1053
        %1427 = vmatpush1.bf16.msra.mxu0 %v1051
        %1428 = vmatprep.subr.bf16.mxu0 0
        %1429 = vmatpush1.bf16.msra.mxu0 0
        %1430 = vmatprep.subr.bf16.mxu0 0
        %1431 = vmatpush1.bf16.msra.mxu0 0
        %1432 = vmatprep.subr.bf16.mxu0 0
        %1433 = vmatpush1.bf16.msra.mxu0 0
        %1434 = vmatprep.subr.bf16.mxu0 0
        %1435 = vmatpush1.bf16.msra.mxu0 0
        %1436 = vmatprep.subr.bf16.mxu0 0
        %1437 = vmatpush1.bf16.msra.mxu0 0
        %1438 = vmatprep.subr.bf16.mxu0 0
        %1439 = vmatpush1.bf16.msra.mxu0 0
        %1440 = vmatprep.subr.bf16.mxu0 0
        %1441 = vmatpush1.bf16.msra.mxu0 0
        %1442 = vmatprep.subr.bf16.mxu0 0
        %1443 = vmatpush1.bf16.msra.mxu0 0
        %1444 = vmatprep.subr.bf16.mxu0 0
        %1445 = vmatpush1.bf16.msra.mxu0 0
        %1446 = vmatprep.subr.bf16.mxu0 0
        %1447 = vmatpush1.bf16.msra.mxu0 0
        %1448 = vmatprep.subr.bf16.mxu0 0
        %1449 = vmatpush1.bf16.msra.mxu0 0
        %1450 = vmatprep.subr.bf16.mxu0 0
        %1451 = vmatpush1.bf16.msra.mxu0 0
        %1452 = vmatprep.subr.bf16.mxu0 0
        %1453 = vmatpush1.bf16.msra.mxu0 0
        %1454 = vmatprep.subr.bf16.mxu0 0
        %1455 = vmatpush1.bf16.msra.mxu0 0
        %1456 = vmatprep.subr.bf16.mxu0 0
        %1457 = vmatpush1.bf16.msra.mxu0 0
        %1458 = vmatprep.mubr.bf16.mxu0 0
        %1459 = vmatmul.mubr.bf16.gmra.mrb[0].mxu0 %v1018
        %v1460 = vpop.f32.mrb[0].mxu0
        %v1461 = vadd.f32 %v989, %v1460
        %v1462 = vpop.f32.mrb[0].mxu0
        %v1463 = vadd.f32 %v991, %v1462
        %v1464 = vpop.f32.mrb[0].mxu0
        %v1465 = vadd.f32 %v993, %v1464
        %v1466 = vpop.f32.mrb[0].mxu0
        %v1467 = vadd.f32 %v995, %v1466
        %1468 = vmatprep.mubr.bf16.mxu0 0
        %1469 = vmatmul.mubr.bf16.gmra.mrb[0].mxu0 %v1021
        %v1470 = vpop.f32.mrb[0].mxu0
        %v1471 = vadd.f32 %v999, %v1470
        %v1472 = vpop.f32.mrb[0].mxu0
        %v1473 = vadd.f32 %v1001, %v1472
        %v1474 = vpop.f32.mrb[0].mxu0
        %v1475 = vadd.f32 %v1003, %v1474
        %v1476 = vpop.f32.mrb[0].mxu0
        %v1477 = vadd.f32 %v1005, %v1476
        %1478 = vdwg.mxu0
        %s1479 = scalar_lea.vmem %s220, 32
        %v1480 = vld [vmem:[%s1479] sm:$0xf]
        %v1481 = vld [vmem:[%s1479 + $0x4] sm:$0xf]
        %v1482 = vld [vmem:[%s1479 + $0x8] sm:$0xf]
        %v1483 = vld [vmem:[%s1479 + $0xc] sm:$0xf]
        %v1488 = vunpack.c.l.b16 %v1480
        %v1489 = vunpack.c.l.b16 %v1481
        %v1490 = vunpack.c.l.b16 %v1482
        %v1491 = vunpack.c.l.b16 %v1483
        %v1492 = vpack.c.b16 %v1489, %v1488
        %v1493 = vpack.c.b16 %v1491, %v1490
        %1494 = vrot.lane.b32.xlu0 %v402, 126
        %v1495 = vpop.permute.xlu0 %1494
        %1496 = vrot.lane.b32.xlu0 %v403, 126
        %v1497 = vpop.permute.xlu0 %1496
        %1498 = vrot.lane.b32.xlu0 %v405, 126
        %v1499 = vpop.permute.xlu0 %1498
        %1500 = vrot.lane.b32.xlu0 %v406, 126
        %v1501 = vpop.permute.xlu0 %1500
        %1502 = vrot.lane.b32.xlu0 %v408, 126
        %v1503 = vpop.permute.xlu0 %1502
        %1504 = vrot.lane.b32.xlu0 %v409, 126
        %v1505 = vpop.permute.xlu0 %1504
        %1506 = vrot.lane.b32.xlu0 %v411, 126
        %v1507 = vpop.permute.xlu0 %1506
        %1508 = vrot.lane.b32.xlu0 %v412, 126
        %v1509 = vpop.permute.xlu0 %1508
        %1510 = vrot.lane.b32.xlu0 %v414, 126
        %v1511 = vpop.permute.xlu0 %1510
        %1512 = vrot.lane.b32.xlu0 %v415, 126
        %v1513 = vpop.permute.xlu0 %1512
        %1514 = vrot.lane.b32.xlu0 %v417, 126
        %v1515 = vpop.permute.xlu0 %1514
        %1516 = vrot.lane.b32.xlu0 %v418, 126
        %v1517 = vpop.permute.xlu0 %1516
        %1518 = vrot.lane.b32.xlu0 %v420, 126
        %v1519 = vpop.permute.xlu0 %1518
        %1520 = vrot.lane.b32.xlu0 %v421, 126
        %v1521 = vpop.permute.xlu0 %1520
        %1522 = vrot.lane.b32.xlu0 %v423, 126
        %v1523 = vpop.permute.xlu0 %1522
        %1524 = vrot.lane.b32.xlu0 %v425, 126
        %v1525 = vpop.permute.xlu0 %1524
        %1526 = vrot.lane.b32.xlu0 %v443, 126
        %v1527 = vpop.permute.xlu0 %1526
        %vm1528 = vcmask 1031168
        %v1529 = vsel %vm1528, %v1495, %v1497
        %v1530 = vsel %vm1528, %v1497, %v1499
        %v1531 = vsel %vm1528, %v1499, %v1501
        %v1532 = vsel %vm1528, %v1501, %v1503
        %v1533 = vsel %vm1528, %v1503, %v1505
        %v1534 = vsel %vm1528, %v1505, %v1507
        %v1535 = vsel %vm1528, %v1507, %v1509
        %v1536 = vsel %vm1528, %v1509, %v1511
        %v1537 = vsel %vm1528, %v1511, %v1513
        %v1538 = vsel %vm1528, %v1513, %v1515
        %v1539 = vsel %vm1528, %v1515, %v1517
        %v1540 = vsel %vm1528, %v1517, %v1519
        %v1541 = vsel %vm1528, %v1519, %v1521
        %v1542 = vsel %vm1528, %v1521, %v1523
        %v1543 = vsel %vm1528, %v1523, %v1525
        %v1544 = vsel %vm1528, %v1525, %v1527
        %v1546 = vsel %vm527, %v1492, 0
        %v1549 = vsel %vm527, %v1493, 0
        %v1552 = vsel %vm534, %v1529, 0
        %v1555 = vsel %vm534, %v1530, 0
        %v1558 = vsel %vm534, %v1531, 0
        %v1561 = vsel %vm534, %v1532, 0
        %v1564 = vsel %vm534, %v1533, 0
        %v1567 = vsel %vm534, %v1534, 0
        %v1570 = vsel %vm534, %v1535, 0
        %v1573 = vsel %vm534, %v1536, 0
        %v1576 = vsel %vm534, %v1537, 0
        %v1579 = vsel %vm534, %v1538, 0
        %v1582 = vsel %vm534, %v1539, 0
        %v1585 = vsel %vm534, %v1540, 0
        %v1588 = vsel %vm534, %v1541, 0
        %v1591 = vsel %vm534, %v1542, 0
        %v1594 = vsel %vm534, %v1543, 0
        %v1597 = vsel %vm534, %v1544, 0
        %1599 = vmatprep.subr.bf16.mxu0 %v1555
        %1600 = vmatpush1.bf16.msra.mxu0 %v1552
        %1601 = vmatprep.subr.bf16.mxu0 0
        %1602 = vmatpush1.bf16.msra.mxu0 0
        %1603 = vmatprep.subr.bf16.mxu0 0
        %1604 = vmatpush1.bf16.msra.mxu0 0
        %1605 = vmatprep.subr.bf16.mxu0 0
        %1606 = vmatpush1.bf16.msra.mxu0 0
        %1607 = vmatprep.subr.bf16.mxu0 0
        %1608 = vmatpush1.bf16.msra.mxu0 0
        %1609 = vmatprep.subr.bf16.mxu0 0
        %1610 = vmatpush1.bf16.msra.mxu0 0
        %1611 = vmatprep.subr.bf16.mxu0 0
        %1612 = vmatpush1.bf16.msra.mxu0 0
        %1613 = vmatprep.subr.bf16.mxu0 0
        %1614 = vmatpush1.bf16.msra.mxu0 0
        %1615 = vmatprep.subr.bf16.mxu0 0
        %1616 = vmatpush1.bf16.msra.mxu0 0
        %1617 = vmatprep.subr.bf16.mxu0 0
        %1618 = vmatpush1.bf16.msra.mxu0 0
        %1619 = vmatprep.subr.bf16.mxu0 0
        %1620 = vmatpush1.bf16.msra.mxu0 0
        %1621 = vmatprep.subr.bf16.mxu0 0
        %1622 = vmatpush1.bf16.msra.mxu0 0
        %1623 = vmatprep.subr.bf16.mxu0 0
        %1624 = vmatpush1.bf16.msra.mxu0 0
        %1625 = vmatprep.subr.bf16.mxu0 0
        %1626 = vmatpush1.bf16.msra.mxu0 0
        %1627 = vmatprep.subr.bf16.mxu0 0
        %1628 = vmatpush1.bf16.msra.mxu0 0
        %1629 = vmatprep.subr.bf16.mxu0 0
        %1630 = vmatpush1.bf16.msra.mxu0 0
        %1631 = vmatprep.mubr.bf16.mxu0 0
        %1632 = vmatmul.mubr.bf16.gmra.mrb[0].mxu0 %v1546
        %v1633 = vpop.f32.mrb[0].mxu0
        %v1634 = vadd.f32 0.0, %v1633
        %v1635 = vpop.f32.mrb[0].mxu0
        %v1636 = vadd.f32 0.0, %v1635
        %v1637 = vpop.f32.mrb[0].mxu0
        %v1638 = vadd.f32 0.0, %v1637
        %v1639 = vpop.f32.mrb[0].mxu0
        %v1640 = vadd.f32 0.0, %v1639
        %1641 = vmatprep.mubr.bf16.mxu0 0
        %1642 = vmatmul.mubr.bf16.gmra.mrb[0].mxu0 %v1549
        %v1643 = vpop.f32.mrb[0].mxu0
        %v1644 = vadd.f32 0.0, %v1643
        %v1645 = vpop.f32.mrb[0].mxu0
        %v1646 = vadd.f32 0.0, %v1645
        %v1647 = vpop.f32.mrb[0].mxu0
        %v1648 = vadd.f32 0.0, %v1647
        %v1649 = vpop.f32.mrb[0].mxu0
        %v1650 = vadd.f32 0.0, %v1649
        %1651 = vdwg.mxu0
        %1652 = vmatprep.subr.bf16.mxu0 %v1561
        %1653 = vmatpush1.bf16.msra.mxu0 %v1558
        %1654 = vmatprep.subr.bf16.mxu0 0
        %1655 = vmatpush1.bf16.msra.mxu0 0
        %1656 = vmatprep.subr.bf16.mxu0 0
        %1657 = vmatpush1.bf16.msra.mxu0 0
        %1658 = vmatprep.subr.bf16.mxu0 0
        %1659 = vmatpush1.bf16.msra.mxu0 0
        %1660 = vmatprep.subr.bf16.mxu0 0
        %1661 = vmatpush1.bf16.msra.mxu0 0
        %1662 = vmatprep.subr.bf16.mxu0 0
        %1663 = vmatpush1.bf16.msra.mxu0 0
        %1664 = vmatprep.subr.bf16.mxu0 0
        %1665 = vmatpush1.bf16.msra.mxu0 0
        %1666 = vmatprep.subr.bf16.mxu0 0
        %1667 = vmatpush1.bf16.msra.mxu0 0
        %1668 = vmatprep.subr.bf16.mxu0 0
        %1669 = vmatpush1.bf16.msra.mxu0 0
        %1670 = vmatprep.subr.bf16.mxu0 0
        %1671 = vmatpush1.bf16.msra.mxu0 0
        %1672 = vmatprep.subr.bf16.mxu0 0
        %1673 = vmatpush1.bf16.msra.mxu0 0
        %1674 = vmatprep.subr.bf16.mxu0 0
        %1675 = vmatpush1.bf16.msra.mxu0 0
        %1676 = vmatprep.subr.bf16.mxu0 0
        %1677 = vmatpush1.bf16.msra.mxu0 0
        %1678 = vmatprep.subr.bf16.mxu0 0
        %1679 = vmatpush1.bf16.msra.mxu0 0
        %1680 = vmatprep.subr.bf16.mxu0 0
        %1681 = vmatpush1.bf16.msra.mxu0 0
        %1682 = vmatprep.subr.bf16.mxu0 0
        %1683 = vmatpush1.bf16.msra.mxu0 0
        %1684 = vmatprep.mubr.bf16.mxu0 0
        %1685 = vmatmul.mubr.bf16.gmra.mrb[0].mxu0 %v1546
        %v1686 = vpop.f32.mrb[0].mxu0
        %v1687 = vadd.f32 0.0, %v1686
        %v1688 = vpop.f32.mrb[0].mxu0
        %v1689 = vadd.f32 0.0, %v1688
        %v1690 = vpop.f32.mrb[0].mxu0
        %v1691 = vadd.f32 0.0, %v1690
        %v1692 = vpop.f32.mrb[0].mxu0
        %v1693 = vadd.f32 0.0, %v1692
        %1694 = vmatprep.mubr.bf16.mxu0 0
        %1695 = vmatmul.mubr.bf16.gmra.mrb[0].mxu0 %v1549
        %v1696 = vpop.f32.mrb[0].mxu0
        %v1697 = vadd.f32 0.0, %v1696
        %v1698 = vpop.f32.mrb[0].mxu0
        %v1699 = vadd.f32 0.0, %v1698
        %v1700 = vpop.f32.mrb[0].mxu0
        %v1701 = vadd.f32 0.0, %v1700
        %v1702 = vpop.f32.mrb[0].mxu0
        %v1703 = vadd.f32 0.0, %v1702
        %1704 = vdwg.mxu0
        %1705 = vmatprep.subr.bf16.mxu0 %v1567
        %1706 = vmatpush1.bf16.msra.mxu0 %v1564
        %1707 = vmatprep.subr.bf16.mxu0 0
        %1708 = vmatpush1.bf16.msra.mxu0 0
        %1709 = vmatprep.subr.bf16.mxu0 0
        %1710 = vmatpush1.bf16.msra.mxu0 0
        %1711 = vmatprep.subr.bf16.mxu0 0
        %1712 = vmatpush1.bf16.msra.mxu0 0
        %1713 = vmatprep.subr.bf16.mxu0 0
        %1714 = vmatpush1.bf16.msra.mxu0 0
        %1715 = vmatprep.subr.bf16.mxu0 0
        %1716 = vmatpush1.bf16.msra.mxu0 0
        %1717 = vmatprep.subr.bf16.mxu0 0
        %1718 = vmatpush1.bf16.msra.mxu0 0
        %1719 = vmatprep.subr.bf16.mxu0 0
        %1720 = vmatpush1.bf16.msra.mxu0 0
        %1721 = vmatprep.subr.bf16.mxu0 0
        %1722 = vmatpush1.bf16.msra.mxu0 0
        %1723 = vmatprep.subr.bf16.mxu0 0
        %1724 = vmatpush1.bf16.msra.mxu0 0
        %1725 = vmatprep.subr.bf16.mxu0 0
        %1726 = vmatpush1.bf16.msra.mxu0 0
        %1727 = vmatprep.subr.bf16.mxu0 0
        %1728 = vmatpush1.bf16.msra.mxu0 0
        %1729 = vmatprep.subr.bf16.mxu0 0
        %1730 = vmatpush1.bf16.msra.mxu0 0
        %1731 = vmatprep.subr.bf16.mxu0 0
        %1732 = vmatpush1.bf16.msra.mxu0 0
        %1733 = vmatprep.subr.bf16.mxu0 0
        %1734 = vmatpush1.bf16.msra.mxu0 0
        %1735 = vmatprep.subr.bf16.mxu0 0
        %1736 = vmatpush1.bf16.msra.mxu0 0
        %1737 = vmatprep.mubr.bf16.mxu0 0
        %1738 = vmatmul.mubr.bf16.gmra.mrb[0].mxu0 %v1546
        %v1739 = vpop.f32.mrb[0].mxu0
        %v1740 = vadd.f32 0.0, %v1739
        %v1741 = vpop.f32.mrb[0].mxu0
        %v1742 = vadd.f32 0.0, %v1741
        %v1743 = vpop.f32.mrb[0].mxu0
        %v1744 = vadd.f32 0.0, %v1743
        %v1745 = vpop.f32.mrb[0].mxu0
        %v1746 = vadd.f32 0.0, %v1745
        %1747 = vmatprep.mubr.bf16.mxu0 0
        %1748 = vmatmul.mubr.bf16.gmra.mrb[0].mxu0 %v1549
        %v1749 = vpop.f32.mrb[0].mxu0
        %v1750 = vadd.f32 0.0, %v1749
        %v1751 = vpop.f32.mrb[0].mxu0
        %v1752 = vadd.f32 0.0, %v1751
        %v1753 = vpop.f32.mrb[0].mxu0
        %v1754 = vadd.f32 0.0, %v1753
        %v1755 = vpop.f32.mrb[0].mxu0
        %v1756 = vadd.f32 0.0, %v1755
        %1757 = vdwg.mxu0
        %1758 = vmatprep.subr.bf16.mxu0 %v1573
        %1759 = vmatpush1.bf16.msra.mxu0 %v1570
        %1760 = vmatprep.subr.bf16.mxu0 0
        %1761 = vmatpush1.bf16.msra.mxu0 0
        %1762 = vmatprep.subr.bf16.mxu0 0
        %1763 = vmatpush1.bf16.msra.mxu0 0
        %1764 = vmatprep.subr.bf16.mxu0 0
        %1765 = vmatpush1.bf16.msra.mxu0 0
        %1766 = vmatprep.subr.bf16.mxu0 0
        %1767 = vmatpush1.bf16.msra.mxu0 0
        %1768 = vmatprep.subr.bf16.mxu0 0
        %1769 = vmatpush1.bf16.msra.mxu0 0
        %1770 = vmatprep.subr.bf16.mxu0 0
        %1771 = vmatpush1.bf16.msra.mxu0 0
        %1772 = vmatprep.subr.bf16.mxu0 0
        %1773 = vmatpush1.bf16.msra.mxu0 0
        %1774 = vmatprep.subr.bf16.mxu0 0
        %1775 = vmatpush1.bf16.msra.mxu0 0
        %1776 = vmatprep.subr.bf16.mxu0 0
        %1777 = vmatpush1.bf16.msra.mxu0 0
        %1778 = vmatprep.subr.bf16.mxu0 0
        %1779 = vmatpush1.bf16.msra.mxu0 0
        %1780 = vmatprep.subr.bf16.mxu0 0
        %1781 = vmatpush1.bf16.msra.mxu0 0
        %1782 = vmatprep.subr.bf16.mxu0 0
        %1783 = vmatpush1.bf16.msra.mxu0 0
        %1784 = vmatprep.subr.bf16.mxu0 0
        %1785 = vmatpush1.bf16.msra.mxu0 0
        %1786 = vmatprep.subr.bf16.mxu0 0
        %1787 = vmatpush1.bf16.msra.mxu0 0
        %1788 = vmatprep.subr.bf16.mxu0 0
        %1789 = vmatpush1.bf16.msra.mxu0 0
        %1790 = vmatprep.mubr.bf16.mxu0 0
        %1791 = vmatmul.mubr.bf16.gmra.mrb[0].mxu0 %v1546
        %v1792 = vpop.f32.mrb[0].mxu0
        %v1793 = vadd.f32 0.0, %v1792
        %v1794 = vpop.f32.mrb[0].mxu0
        %v1795 = vadd.f32 0.0, %v1794
        %v1796 = vpop.f32.mrb[0].mxu0
        %v1797 = vadd.f32 0.0, %v1796
        %v1798 = vpop.f32.mrb[0].mxu0
        %v1799 = vadd.f32 0.0, %v1798
        %1800 = vmatprep.mubr.bf16.mxu0 0
        %1801 = vmatmul.mubr.bf16.gmra.mrb[0].mxu0 %v1549
        %v1802 = vpop.f32.mrb[0].mxu0
        %v1803 = vadd.f32 0.0, %v1802
        %v1804 = vpop.f32.mrb[0].mxu0
        %v1805 = vadd.f32 0.0, %v1804
        %v1806 = vpop.f32.mrb[0].mxu0
        %v1807 = vadd.f32 0.0, %v1806
        %v1808 = vpop.f32.mrb[0].mxu0
        %v1809 = vadd.f32 0.0, %v1808
        %1810 = vdwg.mxu0
        %1811 = vmatprep.subr.bf16.mxu0 %v1579
        %1812 = vmatpush1.bf16.msra.mxu0 %v1576
        %1813 = vmatprep.subr.bf16.mxu0 0
        %1814 = vmatpush1.bf16.msra.mxu0 0
        %1815 = vmatprep.subr.bf16.mxu0 0
        %1816 = vmatpush1.bf16.msra.mxu0 0
        %1817 = vmatprep.subr.bf16.mxu0 0
        %1818 = vmatpush1.bf16.msra.mxu0 0
        %1819 = vmatprep.subr.bf16.mxu0 0
        %1820 = vmatpush1.bf16.msra.mxu0 0
        %1821 = vmatprep.subr.bf16.mxu0 0
        %1822 = vmatpush1.bf16.msra.mxu0 0
        %1823 = vmatprep.subr.bf16.mxu0 0
        %1824 = vmatpush1.bf16.msra.mxu0 0
        %1825 = vmatprep.subr.bf16.mxu0 0
        %1826 = vmatpush1.bf16.msra.mxu0 0
        %1827 = vmatprep.subr.bf16.mxu0 0
        %1828 = vmatpush1.bf16.msra.mxu0 0
        %1829 = vmatprep.subr.bf16.mxu0 0
        %1830 = vmatpush1.bf16.msra.mxu0 0
        %1831 = vmatprep.subr.bf16.mxu0 0
        %1832 = vmatpush1.bf16.msra.mxu0 0
        %1833 = vmatprep.subr.bf16.mxu0 0
        %1834 = vmatpush1.bf16.msra.mxu0 0
        %1835 = vmatprep.subr.bf16.mxu0 0
        %1836 = vmatpush1.bf16.msra.mxu0 0
        %1837 = vmatprep.subr.bf16.mxu0 0
        %1838 = vmatpush1.bf16.msra.mxu0 0
        %1839 = vmatprep.subr.bf16.mxu0 0
        %1840 = vmatpush1.bf16.msra.mxu0 0
        %1841 = vmatprep.subr.bf16.mxu0 0
        %1842 = vmatpush1.bf16.msra.mxu0 0
        %1843 = vmatprep.mubr.bf16.mxu0 0
        %1844 = vmatmul.mubr.bf16.gmra.mrb[0].mxu0 %v1546
        %v1845 = vpop.f32.mrb[0].mxu0
        %v1846 = vadd.f32 0.0, %v1845
        %v1847 = vpop.f32.mrb[0].mxu0
        %v1848 = vadd.f32 0.0, %v1847
        %v1849 = vpop.f32.mrb[0].mxu0
        %v1850 = vadd.f32 0.0, %v1849
        %v1851 = vpop.f32.mrb[0].mxu0
        %v1852 = vadd.f32 0.0, %v1851
        %1853 = vmatprep.mubr.bf16.mxu0 0
        %1854 = vmatmul.mubr.bf16.gmra.mrb[0].mxu0 %v1549
        %v1855 = vpop.f32.mrb[0].mxu0
        %v1856 = vadd.f32 0.0, %v1855
        %v1857 = vpop.f32.mrb[0].mxu0
        %v1858 = vadd.f32 0.0, %v1857
        %v1859 = vpop.f32.mrb[0].mxu0
        %v1860 = vadd.f32 0.0, %v1859
        %v1861 = vpop.f32.mrb[0].mxu0
        %v1862 = vadd.f32 0.0, %v1861
        %1863 = vdwg.mxu0
        %1864 = vmatprep.subr.bf16.mxu0 %v1585
        %1865 = vmatpush1.bf16.msra.mxu0 %v1582
        %1866 = vmatprep.subr.bf16.mxu0 0
        %1867 = vmatpush1.bf16.msra.mxu0 0
        %1868 = vmatprep.subr.bf16.mxu0 0
        %1869 = vmatpush1.bf16.msra.mxu0 0
        %1870 = vmatprep.subr.bf16.mxu0 0
        %1871 = vmatpush1.bf16.msra.mxu0 0
        %1872 = vmatprep.subr.bf16.mxu0 0
        %1873 = vmatpush1.bf16.msra.mxu0 0
        %1874 = vmatprep.subr.bf16.mxu0 0
        %1875 = vmatpush1.bf16.msra.mxu0 0
        %1876 = vmatprep.subr.bf16.mxu0 0
        %1877 = vmatpush1.bf16.msra.mxu0 0
        %1878 = vmatprep.subr.bf16.mxu0 0
        %1879 = vmatpush1.bf16.msra.mxu0 0
        %1880 = vmatprep.subr.bf16.mxu0 0
        %1881 = vmatpush1.bf16.msra.mxu0 0
        %1882 = vmatprep.subr.bf16.mxu0 0
        %1883 = vmatpush1.bf16.msra.mxu0 0
        %1884 = vmatprep.subr.bf16.mxu0 0
        %1885 = vmatpush1.bf16.msra.mxu0 0
        %1886 = vmatprep.subr.bf16.mxu0 0
        %1887 = vmatpush1.bf16.msra.mxu0 0
        %1888 = vmatprep.subr.bf16.mxu0 0
        %1889 = vmatpush1.bf16.msra.mxu0 0
        %1890 = vmatprep.subr.bf16.mxu0 0
        %1891 = vmatpush1.bf16.msra.mxu0 0
        %1892 = vmatprep.subr.bf16.mxu0 0
        %1893 = vmatpush1.bf16.msra.mxu0 0
        %1894 = vmatprep.subr.bf16.mxu0 0
        %1895 = vmatpush1.bf16.msra.mxu0 0
        %1896 = vmatprep.mubr.bf16.mxu0 0
        %1897 = vmatmul.mubr.bf16.gmra.mrb[0].mxu0 %v1546
        %v1898 = vpop.f32.mrb[0].mxu0
        %v1899 = vadd.f32 0.0, %v1898
        %v1900 = vpop.f32.mrb[0].mxu0
        %v1901 = vadd.f32 0.0, %v1900
        %v1902 = vpop.f32.mrb[0].mxu0
        %v1903 = vadd.f32 0.0, %v1902
        %v1904 = vpop.f32.mrb[0].mxu0
        %v1905 = vadd.f32 0.0, %v1904
        %1906 = vmatprep.mubr.bf16.mxu0 0
        %1907 = vmatmul.mubr.bf16.gmra.mrb[0].mxu0 %v1549
        %v1908 = vpop.f32.mrb[0].mxu0
        %v1909 = vadd.f32 0.0, %v1908
        %v1910 = vpop.f32.mrb[0].mxu0
        %v1911 = vadd.f32 0.0, %v1910
        %v1912 = vpop.f32.mrb[0].mxu0
        %v1913 = vadd.f32 0.0, %v1912
        %v1914 = vpop.f32.mrb[0].mxu0
        %v1915 = vadd.f32 0.0, %v1914
        %1916 = vdwg.mxu0
        %1917 = vmatprep.subr.bf16.mxu0 %v1591
        %1918 = vmatpush1.bf16.msra.mxu0 %v1588
        %1919 = vmatprep.subr.bf16.mxu0 0
        %1920 = vmatpush1.bf16.msra.mxu0 0
        %1921 = vmatprep.subr.bf16.mxu0 0
        %1922 = vmatpush1.bf16.msra.mxu0 0
        %1923 = vmatprep.subr.bf16.mxu0 0
        %1924 = vmatpush1.bf16.msra.mxu0 0
        %1925 = vmatprep.subr.bf16.mxu0 0
        %1926 = vmatpush1.bf16.msra.mxu0 0
        %1927 = vmatprep.subr.bf16.mxu0 0
        %1928 = vmatpush1.bf16.msra.mxu0 0
        %1929 = vmatprep.subr.bf16.mxu0 0
        %1930 = vmatpush1.bf16.msra.mxu0 0
        %1931 = vmatprep.subr.bf16.mxu0 0
        %1932 = vmatpush1.bf16.msra.mxu0 0
        %1933 = vmatprep.subr.bf16.mxu0 0
        %1934 = vmatpush1.bf16.msra.mxu0 0
        %1935 = vmatprep.subr.bf16.mxu0 0
        %1936 = vmatpush1.bf16.msra.mxu0 0
        %1937 = vmatprep.subr.bf16.mxu0 0
        %1938 = vmatpush1.bf16.msra.mxu0 0
        %1939 = vmatprep.subr.bf16.mxu0 0
        %1940 = vmatpush1.bf16.msra.mxu0 0
        %1941 = vmatprep.subr.bf16.mxu0 0
        %1942 = vmatpush1.bf16.msra.mxu0 0
        %1943 = vmatprep.subr.bf16.mxu0 0
        %1944 = vmatpush1.bf16.msra.mxu0 0
        %1945 = vmatprep.subr.bf16.mxu0 0
        %1946 = vmatpush1.bf16.msra.mxu0 0
        %1947 = vmatprep.subr.bf16.mxu0 0
        %1948 = vmatpush1.bf16.msra.mxu0 0
        %1949 = vmatprep.mubr.bf16.mxu0 0
        %1950 = vmatmul.mubr.bf16.gmra.mrb[0].mxu0 %v1546
        %v1951 = vpop.f32.mrb[0].mxu0
        %v1952 = vadd.f32 0.0, %v1951
        %v1953 = vpop.f32.mrb[0].mxu0
        %v1954 = vadd.f32 0.0, %v1953
        %v1955 = vpop.f32.mrb[0].mxu0
        %v1956 = vadd.f32 0.0, %v1955
        %v1957 = vpop.f32.mrb[0].mxu0
        %v1958 = vadd.f32 0.0, %v1957
        %1959 = vmatprep.mubr.bf16.mxu0 0
        %1960 = vmatmul.mubr.bf16.gmra.mrb[0].mxu0 %v1549
        %v1961 = vpop.f32.mrb[0].mxu0
        %v1962 = vadd.f32 0.0, %v1961
        %v1963 = vpop.f32.mrb[0].mxu0
        %v1964 = vadd.f32 0.0, %v1963
        %v1965 = vpop.f32.mrb[0].mxu0
        %v1966 = vadd.f32 0.0, %v1965
        %v1967 = vpop.f32.mrb[0].mxu0
        %v1968 = vadd.f32 0.0, %v1967
        %1969 = vdwg.mxu0
        %1970 = vmatprep.subr.bf16.mxu0 %v1597
        %1971 = vmatpush1.bf16.msra.mxu0 %v1594
        %1972 = vmatprep.subr.bf16.mxu0 0
        %1973 = vmatpush1.bf16.msra.mxu0 0
        %1974 = vmatprep.subr.bf16.mxu0 0
        %1975 = vmatpush1.bf16.msra.mxu0 0
        %1976 = vmatprep.subr.bf16.mxu0 0
        %1977 = vmatpush1.bf16.msra.mxu0 0
        %1978 = vmatprep.subr.bf16.mxu0 0
        %1979 = vmatpush1.bf16.msra.mxu0 0
        %1980 = vmatprep.subr.bf16.mxu0 0
        %1981 = vmatpush1.bf16.msra.mxu0 0
        %1982 = vmatprep.subr.bf16.mxu0 0
        %1983 = vmatpush1.bf16.msra.mxu0 0
        %1984 = vmatprep.subr.bf16.mxu0 0
        %1985 = vmatpush1.bf16.msra.mxu0 0
        %1986 = vmatprep.subr.bf16.mxu0 0
        %1987 = vmatpush1.bf16.msra.mxu0 0
        %1988 = vmatprep.subr.bf16.mxu0 0
        %1989 = vmatpush1.bf16.msra.mxu0 0
        %1990 = vmatprep.subr.bf16.mxu0 0
        %1991 = vmatpush1.bf16.msra.mxu0 0
        %1992 = vmatprep.subr.bf16.mxu0 0
        %1993 = vmatpush1.bf16.msra.mxu0 0
        %1994 = vmatprep.subr.bf16.mxu0 0
        %1995 = vmatpush1.bf16.msra.mxu0 0
        %1996 = vmatprep.subr.bf16.mxu0 0
        %1997 = vmatpush1.bf16.msra.mxu0 0
        %1998 = vmatprep.subr.bf16.mxu0 0
        %1999 = vmatpush1.bf16.msra.mxu0 0
        %2000 = vmatprep.subr.bf16.mxu0 0
        %2001 = vmatpush1.bf16.msra.mxu0 0
        %2002 = vmatprep.mubr.bf16.mxu0 0
        %2003 = vmatmul.mubr.bf16.gmra.mrb[0].mxu0 %v1546
        %v2004 = vpop.f32.mrb[0].mxu0
        %v2005 = vadd.f32 0.0, %v2004
        %v2006 = vpop.f32.mrb[0].mxu0
        %v2007 = vadd.f32 0.0, %v2006
        %v2008 = vpop.f32.mrb[0].mxu0
        %v2009 = vadd.f32 0.0, %v2008
        %v2010 = vpop.f32.mrb[0].mxu0
        %v2011 = vadd.f32 0.0, %v2010
        %2012 = vmatprep.mubr.bf16.mxu0 0
        %2013 = vmatmul.mubr.bf16.gmra.mrb[0].mxu0 %v1549
        %v2014 = vpop.f32.mrb[0].mxu0
        %v2015 = vadd.f32 0.0, %v2014
        %v2016 = vpop.f32.mrb[0].mxu0
        %v2017 = vadd.f32 0.0, %v2016
        %v2018 = vpop.f32.mrb[0].mxu0
        %v2019 = vadd.f32 0.0, %v2018
        %v2020 = vpop.f32.mrb[0].mxu0
        %v2021 = vadd.f32 0.0, %v2020
        %2022 = vdwg.mxu0
        %v2023 = vadd.f32 %v1090, %v1634
        %v2024 = vadd.f32 %v1092, %v1636
        %v2025 = vadd.f32 %v1143, %v1687
        %v2026 = vadd.f32 %v1145, %v1689
        %v2027 = vadd.f32 %v1196, %v1740
        %v2028 = vadd.f32 %v1198, %v1742
        %v2029 = vadd.f32 %v1249, %v1793
        %v2030 = vadd.f32 %v1251, %v1795
        %v2031 = vadd.f32 %v1302, %v1846
        %v2032 = vadd.f32 %v1304, %v1848
        %v2033 = vadd.f32 %v1355, %v1899
        %v2034 = vadd.f32 %v1357, %v1901
        %v2035 = vadd.f32 %v1408, %v1952
        %v2036 = vadd.f32 %v1410, %v1954
        %v2037 = vadd.f32 %v1461, %v2005
        %v2038 = vadd.f32 %v1463, %v2007
        %v2039 = vadd.f32 %v1094, %v1638
        %v2040 = vadd.f32 %v1096, %v1640
        %v2041 = vadd.f32 %v1147, %v1691
        %v2042 = vadd.f32 %v1149, %v1693
        %v2043 = vadd.f32 %v1200, %v1744
        %v2044 = vadd.f32 %v1202, %v1746
        %v2045 = vadd.f32 %v1253, %v1797
        %v2046 = vadd.f32 %v1255, %v1799
        %v2047 = vadd.f32 %v1306, %v1850
        %v2048 = vadd.f32 %v1308, %v1852
        %v2049 = vadd.f32 %v1359, %v1903
        %v2050 = vadd.f32 %v1361, %v1905
        %v2051 = vadd.f32 %v1412, %v1956
        %v2052 = vadd.f32 %v1414, %v1958
        %v2053 = vadd.f32 %v1465, %v2009
        %v2054 = vadd.f32 %v1467, %v2011
        %v2055 = vadd.f32 %v1100, %v1644
        %v2056 = vadd.f32 %v1102, %v1646
        %v2057 = vadd.f32 %v1153, %v1697
        %v2058 = vadd.f32 %v1155, %v1699
        %v2059 = vadd.f32 %v1206, %v1750
        %v2060 = vadd.f32 %v1208, %v1752
        %v2061 = vadd.f32 %v1259, %v1803
        %v2062 = vadd.f32 %v1261, %v1805
        %v2063 = vadd.f32 %v1312, %v1856
        %v2064 = vadd.f32 %v1314, %v1858
        %v2065 = vadd.f32 %v1365, %v1909
        %v2066 = vadd.f32 %v1367, %v1911
        %v2067 = vadd.f32 %v1418, %v1962
        %v2068 = vadd.f32 %v1420, %v1964
        %v2069 = vadd.f32 %v1471, %v2015
        %v2070 = vadd.f32 %v1473, %v2017
        %v2071 = vadd.f32 %v1104, %v1648
        %v2072 = vadd.f32 %v1106, %v1650
        %v2073 = vadd.f32 %v1157, %v1701
        %v2074 = vadd.f32 %v1159, %v1703
        %v2075 = vadd.f32 %v1210, %v1754
        %v2076 = vadd.f32 %v1212, %v1756
        %v2077 = vadd.f32 %v1263, %v1807
        %v2078 = vadd.f32 %v1265, %v1809
        %v2079 = vadd.f32 %v1316, %v1860
        %v2080 = vadd.f32 %v1318, %v1862
        %v2081 = vadd.f32 %v1369, %v1913
        %v2082 = vadd.f32 %v1371, %v1915
        %v2083 = vadd.f32 %v1422, %v1966
        %v2084 = vadd.f32 %v1424, %v1968
        %v2085 = vadd.f32 %v1475, %v2019
        %v2086 = vadd.f32 %v1477, %v2021
        %v2087 = vld [vmem:[%s2] sm:$0xff]
        %v2088 = vld [vmem:[%s2 + $0x8] sm:$0xff]
        %v2091 = vlaneseq
        %v2092 = vshrl.u32 %v2091, 7
        %v2093 = vsub.s32 0, %v2092
        %v2094 = vrot.slane %v2087, %v2093
        %v2095 = vlaneseq
        %v2096 = vshrl.u32 %v2095, 7
        %v2097 = vsub.s32 1, %v2096
        %v2098 = vrot.slane %v2087, %v2097
        %v2099 = vlaneseq
        %v2100 = vshrl.u32 %v2099, 7
        %v2101 = vsub.s32 2, %v2100
        %v2102 = vrot.slane %v2087, %v2101
        %v2103 = vlaneseq
        %v2104 = vshrl.u32 %v2103, 7
        %v2105 = vsub.s32 3, %v2104
        %v2106 = vrot.slane %v2087, %v2105
        %v2107 = vlaneseq
        %v2108 = vshrl.u32 %v2107, 7
        %v2109 = vsub.s32 4, %v2108
        %v2110 = vrot.slane %v2087, %v2109
        %v2111 = vlaneseq
        %v2112 = vshrl.u32 %v2111, 7
        %v2113 = vsub.s32 5, %v2112
        %v2114 = vrot.slane %v2087, %v2113
        %v2115 = vlaneseq
        %v2116 = vshrl.u32 %v2115, 7
        %v2117 = vsub.s32 6, %v2116
        %v2118 = vrot.slane %v2087, %v2117
        %v2119 = vlaneseq
        %v2120 = vshrl.u32 %v2119, 7
        %v2121 = vsub.s32 7, %v2120
        %v2122 = vrot.slane %v2087, %v2121
        %v2123 = vlaneseq
        %v2124 = vshrl.u32 %v2123, 7
        %v2125 = vsub.s32 0, %v2124
        %v2126 = vrot.slane %v2088, %v2125
        %v2127 = vlaneseq
        %v2128 = vshrl.u32 %v2127, 7
        %v2129 = vsub.s32 1, %v2128
        %v2130 = vrot.slane %v2088, %v2129
        %v2131 = vlaneseq
        %v2132 = vshrl.u32 %v2131, 7
        %v2133 = vsub.s32 2, %v2132
        %v2134 = vrot.slane %v2088, %v2133
        %v2135 = vlaneseq
        %v2136 = vshrl.u32 %v2135, 7
        %v2137 = vsub.s32 3, %v2136
        %v2138 = vrot.slane %v2088, %v2137
        %v2139 = vlaneseq
        %v2140 = vshrl.u32 %v2139, 7
        %v2141 = vsub.s32 4, %v2140
        %v2142 = vrot.slane %v2088, %v2141
        %v2143 = vlaneseq
        %v2144 = vshrl.u32 %v2143, 7
        %v2145 = vsub.s32 5, %v2144
        %v2146 = vrot.slane %v2088, %v2145
        %v2147 = vlaneseq
        %v2148 = vshrl.u32 %v2147, 7
        %v2149 = vsub.s32 6, %v2148
        %v2150 = vrot.slane %v2088, %v2149
        %v2151 = vlaneseq
        %v2152 = vshrl.u32 %v2151, 7
        %v2153 = vsub.s32 7, %v2152
        %v2154 = vrot.slane %v2088, %v2153
        %v2171 = vmul.f32 %v2023, %v2094
        %v2172 = vmul.f32 %v2024, %v2098
        %v2173 = vmul.f32 %v2025, %v2102
        %v2174 = vmul.f32 %v2026, %v2106
        %v2175 = vmul.f32 %v2027, %v2110
        %v2176 = vmul.f32 %v2028, %v2114
        %v2177 = vmul.f32 %v2029, %v2118
        %v2178 = vmul.f32 %v2030, %v2122
        %v2179 = vmul.f32 %v2031, %v2126
        %v2180 = vmul.f32 %v2032, %v2130
        %v2181 = vmul.f32 %v2033, %v2134
        %v2182 = vmul.f32 %v2034, %v2138
        %v2183 = vmul.f32 %v2035, %v2142
        %v2184 = vmul.f32 %v2036, %v2146
        %v2185 = vmul.f32 %v2037, %v2150
        %v2186 = vmul.f32 %v2038, %v2154
        %v2187 = vmul.f32 %v2039, %v2094
        %v2188 = vmul.f32 %v2040, %v2098
        %v2189 = vmul.f32 %v2041, %v2102
        %v2190 = vmul.f32 %v2042, %v2106
        %v2191 = vmul.f32 %v2043, %v2110
        %v2192 = vmul.f32 %v2044, %v2114
        %v2193 = vmul.f32 %v2045, %v2118
        %v2194 = vmul.f32 %v2046, %v2122
        %v2195 = vmul.f32 %v2047, %v2126
        %v2196 = vmul.f32 %v2048, %v2130
        %v2197 = vmul.f32 %v2049, %v2134
        %v2198 = vmul.f32 %v2050, %v2138
        %v2199 = vmul.f32 %v2051, %v2142
        %v2200 = vmul.f32 %v2052, %v2146
        %v2201 = vmul.f32 %v2053, %v2150
        %v2202 = vmul.f32 %v2054, %v2154
        %v2203 = vmul.f32 %v2055, %v2094
        %v2204 = vmul.f32 %v2056, %v2098
        %v2205 = vmul.f32 %v2057, %v2102
        %v2206 = vmul.f32 %v2058, %v2106
        %v2207 = vmul.f32 %v2059, %v2110
        %v2208 = vmul.f32 %v2060, %v2114
        %v2209 = vmul.f32 %v2061, %v2118
        %v2210 = vmul.f32 %v2062, %v2122
        %v2211 = vmul.f32 %v2063, %v2126
        %v2212 = vmul.f32 %v2064, %v2130
        %v2213 = vmul.f32 %v2065, %v2134
        %v2214 = vmul.f32 %v2066, %v2138
        %v2215 = vmul.f32 %v2067, %v2142
        %v2216 = vmul.f32 %v2068, %v2146
        %v2217 = vmul.f32 %v2069, %v2150
        %v2218 = vmul.f32 %v2070, %v2154
        %v2219 = vmul.f32 %v2071, %v2094
        %v2220 = vmul.f32 %v2072, %v2098
        %v2221 = vmul.f32 %v2073, %v2102
        %v2222 = vmul.f32 %v2074, %v2106
        %v2223 = vmul.f32 %v2075, %v2110
        %v2224 = vmul.f32 %v2076, %v2114
        %v2225 = vmul.f32 %v2077, %v2118
        %v2226 = vmul.f32 %v2078, %v2122
        %v2227 = vmul.f32 %v2079, %v2126
        %v2228 = vmul.f32 %v2080, %v2130
        %v2229 = vmul.f32 %v2081, %v2134
        %v2230 = vmul.f32 %v2082, %v2138
        %v2231 = vmul.f32 %v2083, %v2142
        %v2232 = vmul.f32 %v2084, %v2146
        %v2233 = vmul.f32 %v2085, %v2150
        %v2234 = vmul.f32 %v2086, %v2154
        %v2235 = vadd.f32 %v2171, %v2172
        %v2236 = vadd.f32 %v2235, %v2173
        %v2237 = vadd.f32 %v2236, %v2174
        %v2238 = vadd.f32 %v2237, %v2175
        %v2239 = vadd.f32 %v2238, %v2176
        %v2240 = vadd.f32 %v2239, %v2177
        %v2241 = vadd.f32 %v2240, %v2178
        %v2242 = vadd.f32 %v2241, %v2179
        %v2243 = vadd.f32 %v2242, %v2180
        %v2244 = vadd.f32 %v2243, %v2181
        %v2245 = vadd.f32 %v2244, %v2182
        %v2246 = vadd.f32 %v2245, %v2183
        %v2247 = vadd.f32 %v2246, %v2184
        %v2248 = vadd.f32 %v2247, %v2185
        %v2249 = vadd.f32 %v2248, %v2186
        %2250 = vadd.xlane.f32.xlu0 %v2249
        %v2251 = vpop.xlane.xlu0 %2250
        %v2252 = vadd.f32 %v2187, %v2188
        %v2253 = vadd.f32 %v2252, %v2189
        %v2254 = vadd.f32 %v2253, %v2190
        %v2255 = vadd.f32 %v2254, %v2191
        %v2256 = vadd.f32 %v2255, %v2192
        %v2257 = vadd.f32 %v2256, %v2193
        %v2258 = vadd.f32 %v2257, %v2194
        %v2259 = vadd.f32 %v2258, %v2195
        %v2260 = vadd.f32 %v2259, %v2196
        %v2261 = vadd.f32 %v2260, %v2197
        %v2262 = vadd.f32 %v2261, %v2198
        %v2263 = vadd.f32 %v2262, %v2199
        %v2264 = vadd.f32 %v2263, %v2200
        %v2265 = vadd.f32 %v2264, %v2201
        %v2266 = vadd.f32 %v2265, %v2202
        %2267 = vadd.xlane.f32.xlu0 %v2266
        %v2268 = vpop.xlane.xlu0 %2267
        %v2269 = vadd.f32 %v2203, %v2204
        %v2270 = vadd.f32 %v2269, %v2205
        %v2271 = vadd.f32 %v2270, %v2206
        %v2272 = vadd.f32 %v2271, %v2207
        %v2273 = vadd.f32 %v2272, %v2208
        %v2274 = vadd.f32 %v2273, %v2209
        %v2275 = vadd.f32 %v2274, %v2210
        %v2276 = vadd.f32 %v2275, %v2211
        %v2277 = vadd.f32 %v2276, %v2212
        %v2278 = vadd.f32 %v2277, %v2213
        %v2279 = vadd.f32 %v2278, %v2214
        %v2280 = vadd.f32 %v2279, %v2215
        %v2281 = vadd.f32 %v2280, %v2216
        %v2282 = vadd.f32 %v2281, %v2217
        %v2283 = vadd.f32 %v2282, %v2218
        %2284 = vadd.xlane.f32.xlu0 %v2283
        %v2285 = vpop.xlane.xlu0 %2284
        %v2286 = vadd.f32 %v2219, %v2220
        %v2287 = vadd.f32 %v2286, %v2221
        %v2288 = vadd.f32 %v2287, %v2222
        %v2289 = vadd.f32 %v2288, %v2223
        %v2290 = vadd.f32 %v2289, %v2224
        %v2291 = vadd.f32 %v2290, %v2225
        %v2292 = vadd.f32 %v2291, %v2226
        %v2293 = vadd.f32 %v2292, %v2227
        %v2294 = vadd.f32 %v2293, %v2228
        %v2295 = vadd.f32 %v2294, %v2229
        %v2296 = vadd.f32 %v2295, %v2230
        %v2297 = vadd.f32 %v2296, %v2231
        %v2298 = vadd.f32 %v2297, %v2232
        %v2299 = vadd.f32 %v2298, %v2233
        %v2300 = vadd.f32 %v2299, %v2234
        %2301 = vadd.xlane.f32.xlu0 %v2300
        %v2302 = vpop.xlane.xlu0 %2301
        %v2303 = vadd.f32 %v2251, %v2268
        %v2304 = vadd.f32 %v2303, %v2285
        %v2305 = vadd.f32 %v2304, %v2302
        %v2306 = vmul.f32 %v2171, %v2171
        %v2307 = vmul.f32 %v2172, %v2172
        %v2308 = vmul.f32 %v2173, %v2173
        %v2309 = vmul.f32 %v2174, %v2174
        %v2310 = vmul.f32 %v2175, %v2175
        %v2311 = vmul.f32 %v2176, %v2176
        %v2312 = vmul.f32 %v2177, %v2177
        %v2313 = vmul.f32 %v2178, %v2178
        %v2314 = vmul.f32 %v2179, %v2179
        %v2315 = vmul.f32 %v2180, %v2180
        %v2316 = vmul.f32 %v2181, %v2181
        %v2317 = vmul.f32 %v2182, %v2182
        %v2318 = vmul.f32 %v2183, %v2183
        %v2319 = vmul.f32 %v2184, %v2184
        %v2320 = vmul.f32 %v2185, %v2185
        %v2321 = vmul.f32 %v2186, %v2186
        %v2322 = vmul.f32 %v2187, %v2187
        %v2323 = vmul.f32 %v2188, %v2188
        %v2324 = vmul.f32 %v2189, %v2189
        %v2325 = vmul.f32 %v2190, %v2190
        %v2326 = vmul.f32 %v2191, %v2191
        %v2327 = vmul.f32 %v2192, %v2192
        %v2328 = vmul.f32 %v2193, %v2193
        %v2329 = vmul.f32 %v2194, %v2194
        %v2330 = vmul.f32 %v2195, %v2195
        %v2331 = vmul.f32 %v2196, %v2196
        %v2332 = vmul.f32 %v2197, %v2197
        %v2333 = vmul.f32 %v2198, %v2198
        %v2334 = vmul.f32 %v2199, %v2199
        %v2335 = vmul.f32 %v2200, %v2200
        %v2336 = vmul.f32 %v2201, %v2201
        %v2337 = vmul.f32 %v2202, %v2202
        %v2338 = vmul.f32 %v2203, %v2203
        %v2339 = vmul.f32 %v2204, %v2204
        %v2340 = vmul.f32 %v2205, %v2205
        %v2341 = vmul.f32 %v2206, %v2206
        %v2342 = vmul.f32 %v2207, %v2207
        %v2343 = vmul.f32 %v2208, %v2208
        %v2344 = vmul.f32 %v2209, %v2209
        %v2345 = vmul.f32 %v2210, %v2210
        %v2346 = vmul.f32 %v2211, %v2211
        %v2347 = vmul.f32 %v2212, %v2212
        %v2348 = vmul.f32 %v2213, %v2213
        %v2349 = vmul.f32 %v2214, %v2214
        %v2350 = vmul.f32 %v2215, %v2215
        %v2351 = vmul.f32 %v2216, %v2216
        %v2352 = vmul.f32 %v2217, %v2217
        %v2353 = vmul.f32 %v2218, %v2218
        %v2354 = vmul.f32 %v2219, %v2219
        %v2355 = vmul.f32 %v2220, %v2220
        %v2356 = vmul.f32 %v2221, %v2221
        %v2357 = vmul.f32 %v2222, %v2222
        %v2358 = vmul.f32 %v2223, %v2223
        %v2359 = vmul.f32 %v2224, %v2224
        %v2360 = vmul.f32 %v2225, %v2225
        %v2361 = vmul.f32 %v2226, %v2226
        %v2362 = vmul.f32 %v2227, %v2227
        %v2363 = vmul.f32 %v2228, %v2228
        %v2364 = vmul.f32 %v2229, %v2229
        %v2365 = vmul.f32 %v2230, %v2230
        %v2366 = vmul.f32 %v2231, %v2231
        %v2367 = vmul.f32 %v2232, %v2232
        %v2368 = vmul.f32 %v2233, %v2233
        %v2369 = vmul.f32 %v2234, %v2234
        %v2370 = vadd.f32 %v2306, %v2307
        %v2371 = vadd.f32 %v2370, %v2308
        %v2372 = vadd.f32 %v2371, %v2309
        %v2373 = vadd.f32 %v2372, %v2310
        %v2374 = vadd.f32 %v2373, %v2311
        %v2375 = vadd.f32 %v2374, %v2312
        %v2376 = vadd.f32 %v2375, %v2313
        %v2377 = vadd.f32 %v2376, %v2314
        %v2378 = vadd.f32 %v2377, %v2315
        %v2379 = vadd.f32 %v2378, %v2316
        %v2380 = vadd.f32 %v2379, %v2317
        %v2381 = vadd.f32 %v2380, %v2318
        %v2382 = vadd.f32 %v2381, %v2319
        %v2383 = vadd.f32 %v2382, %v2320
        %v2384 = vadd.f32 %v2383, %v2321
        %2385 = vadd.xlane.f32.xlu0 %v2384
        %v2386 = vpop.xlane.xlu0 %2385
        %v2387 = vadd.f32 %v2322, %v2323
        %v2388 = vadd.f32 %v2387, %v2324
        %v2389 = vadd.f32 %v2388, %v2325
        %v2390 = vadd.f32 %v2389, %v2326
        %v2391 = vadd.f32 %v2390, %v2327
        %v2392 = vadd.f32 %v2391, %v2328
        %v2393 = vadd.f32 %v2392, %v2329
        %v2394 = vadd.f32 %v2393, %v2330
        %v2395 = vadd.f32 %v2394, %v2331
        %v2396 = vadd.f32 %v2395, %v2332
        %v2397 = vadd.f32 %v2396, %v2333
        %v2398 = vadd.f32 %v2397, %v2334
        %v2399 = vadd.f32 %v2398, %v2335
        %v2400 = vadd.f32 %v2399, %v2336
        %v2401 = vadd.f32 %v2400, %v2337
        %2402 = vadd.xlane.f32.xlu0 %v2401
        %v2403 = vpop.xlane.xlu0 %2402
        %v2404 = vadd.f32 %v2338, %v2339
        %v2405 = vadd.f32 %v2404, %v2340
        %v2406 = vadd.f32 %v2405, %v2341
        %v2407 = vadd.f32 %v2406, %v2342
        %v2408 = vadd.f32 %v2407, %v2343
        %v2409 = vadd.f32 %v2408, %v2344
        %v2410 = vadd.f32 %v2409, %v2345
        %v2411 = vadd.f32 %v2410, %v2346
        %v2412 = vadd.f32 %v2411, %v2347
        %v2413 = vadd.f32 %v2412, %v2348
        %v2414 = vadd.f32 %v2413, %v2349
        %v2415 = vadd.f32 %v2414, %v2350
        %v2416 = vadd.f32 %v2415, %v2351
        %v2417 = vadd.f32 %v2416, %v2352
        %v2418 = vadd.f32 %v2417, %v2353
        %2419 = vadd.xlane.f32.xlu0 %v2418
        %v2420 = vpop.xlane.xlu0 %2419
        %v2421 = vadd.f32 %v2354, %v2355
        %v2422 = vadd.f32 %v2421, %v2356
        %v2423 = vadd.f32 %v2422, %v2357
        %v2424 = vadd.f32 %v2423, %v2358
        %v2425 = vadd.f32 %v2424, %v2359
        %v2426 = vadd.f32 %v2425, %v2360
        %v2427 = vadd.f32 %v2426, %v2361
        %v2428 = vadd.f32 %v2427, %v2362
        %v2429 = vadd.f32 %v2428, %v2363
        %v2430 = vadd.f32 %v2429, %v2364
        %v2431 = vadd.f32 %v2430, %v2365
        %v2432 = vadd.f32 %v2431, %v2366
        %v2433 = vadd.f32 %v2432, %v2367
        %v2434 = vadd.f32 %v2433, %v2368
        %v2435 = vadd.f32 %v2434, %v2369
        %2436 = vadd.xlane.f32.xlu0 %v2435
        %v2437 = vpop.xlane.xlu0 %2436
        %v2438 = vadd.f32 %v2386, %v2403
        %v2439 = vadd.f32 %v2438, %v2420
        %v2440 = vadd.f32 %v2439, %v2437
        %v2441 = vrcp.pop 1024.0
        %v2442 = vmul.f32 %v2305, %v2441
        %v2443 = vmul.f32 %v2440, %v2441
        %v2444 = vmul.f32 %v2442, %v2442
        %v2445 = vsub.f32 %v2443, %v2444
        %v2446 = vmax.f32 %v2445, 0.0
        %v2447 = vadd.f32 %v2446, 1e-05
        %v2448 = vrsqrt.pop %v2447
        %v2449 = vsub.f32 %v2171, %v2442
        %v2450 = vsub.f32 %v2172, %v2442
        %v2451 = vsub.f32 %v2173, %v2442
        %v2452 = vsub.f32 %v2174, %v2442
        %v2453 = vsub.f32 %v2175, %v2442
        %v2454 = vsub.f32 %v2176, %v2442
        %v2455 = vsub.f32 %v2177, %v2442
        %v2456 = vsub.f32 %v2178, %v2442
        %v2457 = vsub.f32 %v2179, %v2442
        %v2458 = vsub.f32 %v2180, %v2442
        %v2459 = vsub.f32 %v2181, %v2442
        %v2460 = vsub.f32 %v2182, %v2442
        %v2461 = vsub.f32 %v2183, %v2442
        %v2462 = vsub.f32 %v2184, %v2442
        %v2463 = vsub.f32 %v2185, %v2442
        %v2464 = vsub.f32 %v2186, %v2442
        %v2465 = vsub.f32 %v2187, %v2442
        %v2466 = vsub.f32 %v2188, %v2442
        %v2467 = vsub.f32 %v2189, %v2442
        %v2468 = vsub.f32 %v2190, %v2442
        %v2469 = vsub.f32 %v2191, %v2442
        %v2470 = vsub.f32 %v2192, %v2442
        %v2471 = vsub.f32 %v2193, %v2442
        %v2472 = vsub.f32 %v2194, %v2442
        %v2473 = vsub.f32 %v2195, %v2442
        %v2474 = vsub.f32 %v2196, %v2442
        %v2475 = vsub.f32 %v2197, %v2442
        %v2476 = vsub.f32 %v2198, %v2442
        %v2477 = vsub.f32 %v2199, %v2442
        %v2478 = vsub.f32 %v2200, %v2442
        %v2479 = vsub.f32 %v2201, %v2442
        %v2480 = vsub.f32 %v2202, %v2442
        %v2481 = vsub.f32 %v2203, %v2442
        %v2482 = vsub.f32 %v2204, %v2442
        %v2483 = vsub.f32 %v2205, %v2442
        %v2484 = vsub.f32 %v2206, %v2442
        %v2485 = vsub.f32 %v2207, %v2442
        %v2486 = vsub.f32 %v2208, %v2442
        %v2487 = vsub.f32 %v2209, %v2442
        %v2488 = vsub.f32 %v2210, %v2442
        %v2489 = vsub.f32 %v2211, %v2442
        %v2490 = vsub.f32 %v2212, %v2442
        %v2491 = vsub.f32 %v2213, %v2442
        %v2492 = vsub.f32 %v2214, %v2442
        %v2493 = vsub.f32 %v2215, %v2442
        %v2494 = vsub.f32 %v2216, %v2442
        %v2495 = vsub.f32 %v2217, %v2442
        %v2496 = vsub.f32 %v2218, %v2442
        %v2497 = vsub.f32 %v2219, %v2442
        %v2498 = vsub.f32 %v2220, %v2442
        %v2499 = vsub.f32 %v2221, %v2442
        %v2500 = vsub.f32 %v2222, %v2442
        %v2501 = vsub.f32 %v2223, %v2442
        %v2502 = vsub.f32 %v2224, %v2442
        %v2503 = vsub.f32 %v2225, %v2442
        %v2504 = vsub.f32 %v2226, %v2442
        %v2505 = vsub.f32 %v2227, %v2442
        %v2506 = vsub.f32 %v2228, %v2442
        %v2507 = vsub.f32 %v2229, %v2442
        %v2508 = vsub.f32 %v2230, %v2442
        %v2509 = vsub.f32 %v2231, %v2442
        %v2510 = vsub.f32 %v2232, %v2442
        %v2511 = vsub.f32 %v2233, %v2442
        %v2512 = vsub.f32 %v2234, %v2442
        %v2513 = vmul.f32 %v2449, %v2448
        %v2514 = vmul.f32 %v2450, %v2448
        %v2515 = vmul.f32 %v2451, %v2448
        %v2516 = vmul.f32 %v2452, %v2448
        %v2517 = vmul.f32 %v2453, %v2448
        %v2518 = vmul.f32 %v2454, %v2448
        %v2519 = vmul.f32 %v2455, %v2448
        %v2520 = vmul.f32 %v2456, %v2448
        %v2521 = vmul.f32 %v2457, %v2448
        %v2522 = vmul.f32 %v2458, %v2448
        %v2523 = vmul.f32 %v2459, %v2448
        %v2524 = vmul.f32 %v2460, %v2448
        %v2525 = vmul.f32 %v2461, %v2448
        %v2526 = vmul.f32 %v2462, %v2448
        %v2527 = vmul.f32 %v2463, %v2448
        %v2528 = vmul.f32 %v2464, %v2448
        %v2529 = vmul.f32 %v2465, %v2448
        %v2530 = vmul.f32 %v2466, %v2448
        %v2531 = vmul.f32 %v2467, %v2448
        %v2532 = vmul.f32 %v2468, %v2448
        %v2533 = vmul.f32 %v2469, %v2448
        %v2534 = vmul.f32 %v2470, %v2448
        %v2535 = vmul.f32 %v2471, %v2448
        %v2536 = vmul.f32 %v2472, %v2448
        %v2537 = vmul.f32 %v2473, %v2448
        %v2538 = vmul.f32 %v2474, %v2448
        %v2539 = vmul.f32 %v2475, %v2448
        %v2540 = vmul.f32 %v2476, %v2448
        %v2541 = vmul.f32 %v2477, %v2448
        %v2542 = vmul.f32 %v2478, %v2448
        %v2543 = vmul.f32 %v2479, %v2448
        %v2544 = vmul.f32 %v2480, %v2448
        %v2545 = vmul.f32 %v2481, %v2448
        %v2546 = vmul.f32 %v2482, %v2448
        %v2547 = vmul.f32 %v2483, %v2448
        %v2548 = vmul.f32 %v2484, %v2448
        %v2549 = vmul.f32 %v2485, %v2448
        %v2550 = vmul.f32 %v2486, %v2448
        %v2551 = vmul.f32 %v2487, %v2448
        %v2552 = vmul.f32 %v2488, %v2448
        %v2553 = vmul.f32 %v2489, %v2448
        %v2554 = vmul.f32 %v2490, %v2448
        %v2555 = vmul.f32 %v2491, %v2448
        %v2556 = vmul.f32 %v2492, %v2448
        %v2557 = vmul.f32 %v2493, %v2448
        %v2558 = vmul.f32 %v2494, %v2448
        %v2559 = vmul.f32 %v2495, %v2448
        %v2560 = vmul.f32 %v2496, %v2448
        %v2561 = vmul.f32 %v2497, %v2448
        %v2562 = vmul.f32 %v2498, %v2448
        %v2563 = vmul.f32 %v2499, %v2448
        %v2564 = vmul.f32 %v2500, %v2448
        %v2565 = vmul.f32 %v2501, %v2448
        %v2566 = vmul.f32 %v2502, %v2448
        %v2567 = vmul.f32 %v2503, %v2448
        %v2568 = vmul.f32 %v2504, %v2448
        %v2569 = vmul.f32 %v2505, %v2448
        %v2570 = vmul.f32 %v2506, %v2448
        %v2571 = vmul.f32 %v2507, %v2448
        %v2572 = vmul.f32 %v2508, %v2448
        %v2573 = vmul.f32 %v2509, %v2448
        %v2574 = vmul.f32 %v2510, %v2448
        %v2575 = vmul.f32 %v2511, %v2448
        %v2576 = vmul.f32 %v2512, %v2448
        %v2577 = vmax.f32 %v2513, 0.0
        %v2578 = vmax.f32 %v2514, 0.0
        %v2579 = vmax.f32 %v2515, 0.0
        %v2580 = vmax.f32 %v2516, 0.0
        %v2581 = vmax.f32 %v2517, 0.0
        %v2582 = vmax.f32 %v2518, 0.0
        %v2583 = vmax.f32 %v2519, 0.0
        %v2584 = vmax.f32 %v2520, 0.0
        %v2585 = vmax.f32 %v2521, 0.0
        %v2586 = vmax.f32 %v2522, 0.0
        %v2587 = vmax.f32 %v2523, 0.0
        %v2588 = vmax.f32 %v2524, 0.0
        %v2589 = vmax.f32 %v2525, 0.0
        %v2590 = vmax.f32 %v2526, 0.0
        %v2591 = vmax.f32 %v2527, 0.0
        %v2592 = vmax.f32 %v2528, 0.0
        %v2593 = vmax.f32 %v2529, 0.0
        %v2594 = vmax.f32 %v2530, 0.0
        %v2595 = vmax.f32 %v2531, 0.0
        %v2596 = vmax.f32 %v2532, 0.0
        %v2597 = vmax.f32 %v2533, 0.0
        %v2598 = vmax.f32 %v2534, 0.0
        %v2599 = vmax.f32 %v2535, 0.0
        %v2600 = vmax.f32 %v2536, 0.0
        %v2601 = vmax.f32 %v2537, 0.0
        %v2602 = vmax.f32 %v2538, 0.0
        %v2603 = vmax.f32 %v2539, 0.0
        %v2604 = vmax.f32 %v2540, 0.0
        %v2605 = vmax.f32 %v2541, 0.0
        %v2606 = vmax.f32 %v2542, 0.0
        %v2607 = vmax.f32 %v2543, 0.0
        %v2608 = vmax.f32 %v2544, 0.0
        %v2609 = vmax.f32 %v2545, 0.0
        %v2610 = vmax.f32 %v2546, 0.0
        %v2611 = vmax.f32 %v2547, 0.0
        %v2612 = vmax.f32 %v2548, 0.0
        %v2613 = vmax.f32 %v2549, 0.0
        %v2614 = vmax.f32 %v2550, 0.0
        %v2615 = vmax.f32 %v2551, 0.0
        %v2616 = vmax.f32 %v2552, 0.0
        %v2617 = vmax.f32 %v2553, 0.0
        %v2618 = vmax.f32 %v2554, 0.0
        %v2619 = vmax.f32 %v2555, 0.0
        %v2620 = vmax.f32 %v2556, 0.0
        %v2621 = vmax.f32 %v2557, 0.0
        %v2622 = vmax.f32 %v2558, 0.0
        %v2623 = vmax.f32 %v2559, 0.0
        %v2624 = vmax.f32 %v2560, 0.0
        %v2625 = vmax.f32 %v2561, 0.0
        %v2626 = vmax.f32 %v2562, 0.0
        %v2627 = vmax.f32 %v2563, 0.0
        %v2628 = vmax.f32 %v2564, 0.0
        %v2629 = vmax.f32 %v2565, 0.0
        %v2630 = vmax.f32 %v2566, 0.0
        %v2631 = vmax.f32 %v2567, 0.0
        %v2632 = vmax.f32 %v2568, 0.0
        %v2633 = vmax.f32 %v2569, 0.0
        %v2634 = vmax.f32 %v2570, 0.0
        %v2635 = vmax.f32 %v2571, 0.0
        %v2636 = vmax.f32 %v2572, 0.0
        %v2637 = vmax.f32 %v2573, 0.0
        %v2638 = vmax.f32 %v2574, 0.0
        %v2639 = vmax.f32 %v2575, 0.0
        %v2640 = vmax.f32 %v2576, 0.0
        %v2641 = vpack.c.bf16 %v2577, %v2577
        %v2642 = vpack.c.bf16 %v2578, %v2578
        %v2643 = vpack.c.bf16 %v2579, %v2579
        %v2644 = vpack.c.bf16 %v2580, %v2580
        %v2645 = vpack.c.bf16 %v2581, %v2581
        %v2646 = vpack.c.bf16 %v2582, %v2582
        %v2647 = vpack.c.bf16 %v2583, %v2583
        %v2648 = vpack.c.bf16 %v2584, %v2584
        %v2649 = vpack.c.bf16 %v2585, %v2585
        %v2650 = vpack.c.bf16 %v2586, %v2586
        %v2651 = vpack.c.bf16 %v2587, %v2587
        %v2652 = vpack.c.bf16 %v2588, %v2588
        %v2653 = vpack.c.bf16 %v2589, %v2589
        %v2654 = vpack.c.bf16 %v2590, %v2590
        %v2655 = vpack.c.bf16 %v2591, %v2591
        %v2656 = vpack.c.bf16 %v2592, %v2592
        %v2657 = vpack.c.bf16 %v2593, %v2593
        %v2658 = vpack.c.bf16 %v2594, %v2594
        %v2659 = vpack.c.bf16 %v2595, %v2595
        %v2660 = vpack.c.bf16 %v2596, %v2596
        %v2661 = vpack.c.bf16 %v2597, %v2597
        %v2662 = vpack.c.bf16 %v2598, %v2598
        %v2663 = vpack.c.bf16 %v2599, %v2599
        %v2664 = vpack.c.bf16 %v2600, %v2600
        %v2665 = vpack.c.bf16 %v2601, %v2601
        %v2666 = vpack.c.bf16 %v2602, %v2602
        %v2667 = vpack.c.bf16 %v2603, %v2603
        %v2668 = vpack.c.bf16 %v2604, %v2604
        %v2669 = vpack.c.bf16 %v2605, %v2605
        %v2670 = vpack.c.bf16 %v2606, %v2606
        %v2671 = vpack.c.bf16 %v2607, %v2607
        %v2672 = vpack.c.bf16 %v2608, %v2608
        %v2673 = vpack.c.bf16 %v2609, %v2609
        %v2674 = vpack.c.bf16 %v2610, %v2610
        %v2675 = vpack.c.bf16 %v2611, %v2611
        %v2676 = vpack.c.bf16 %v2612, %v2612
        %v2677 = vpack.c.bf16 %v2613, %v2613
        %v2678 = vpack.c.bf16 %v2614, %v2614
        %v2679 = vpack.c.bf16 %v2615, %v2615
        %v2680 = vpack.c.bf16 %v2616, %v2616
        %v2681 = vpack.c.bf16 %v2617, %v2617
        %v2682 = vpack.c.bf16 %v2618, %v2618
        %v2683 = vpack.c.bf16 %v2619, %v2619
        %v2684 = vpack.c.bf16 %v2620, %v2620
        %v2685 = vpack.c.bf16 %v2621, %v2621
        %v2686 = vpack.c.bf16 %v2622, %v2622
        %v2687 = vpack.c.bf16 %v2623, %v2623
        %v2688 = vpack.c.bf16 %v2624, %v2624
        %v2689 = vpack.c.bf16 %v2625, %v2625
        %v2690 = vpack.c.bf16 %v2626, %v2626
        %v2691 = vpack.c.bf16 %v2627, %v2627
        %v2692 = vpack.c.bf16 %v2628, %v2628
        %v2693 = vpack.c.bf16 %v2629, %v2629
        %v2694 = vpack.c.bf16 %v2630, %v2630
        %v2695 = vpack.c.bf16 %v2631, %v2631
        %v2696 = vpack.c.bf16 %v2632, %v2632
        %v2697 = vpack.c.bf16 %v2633, %v2633
        %v2698 = vpack.c.bf16 %v2634, %v2634
        %v2699 = vpack.c.bf16 %v2635, %v2635
        %v2700 = vpack.c.bf16 %v2636, %v2636
        %v2701 = vpack.c.bf16 %v2637, %v2637
        %v2702 = vpack.c.bf16 %v2638, %v2638
        %v2703 = vpack.c.bf16 %v2639, %v2639
        %v2704 = vpack.c.bf16 %v2640, %v2640
        %v2769 = vunpack.c.l.b16 %v2641
        %v2770 = vunpack.c.l.b16 %v2642
        %v2771 = vunpack.c.l.b16 %v2643
        %v2772 = vunpack.c.l.b16 %v2644
        %v2773 = vunpack.c.l.b16 %v2645
        %v2774 = vunpack.c.l.b16 %v2646
        %v2775 = vunpack.c.l.b16 %v2647
        %v2776 = vunpack.c.l.b16 %v2648
        %v2777 = vunpack.c.l.b16 %v2649
        %v2778 = vunpack.c.l.b16 %v2650
        %v2779 = vunpack.c.l.b16 %v2651
        %v2780 = vunpack.c.l.b16 %v2652
        %v2781 = vunpack.c.l.b16 %v2653
        %v2782 = vunpack.c.l.b16 %v2654
        %v2783 = vunpack.c.l.b16 %v2655
        %v2784 = vunpack.c.l.b16 %v2656
        %v2785 = vunpack.c.l.b16 %v2657
        %v2786 = vunpack.c.l.b16 %v2658
        %v2787 = vunpack.c.l.b16 %v2659
        %v2788 = vunpack.c.l.b16 %v2660
        %v2789 = vunpack.c.l.b16 %v2661
        %v2790 = vunpack.c.l.b16 %v2662
        %v2791 = vunpack.c.l.b16 %v2663
        %v2792 = vunpack.c.l.b16 %v2664
        %v2793 = vunpack.c.l.b16 %v2665
        %v2794 = vunpack.c.l.b16 %v2666
        %v2795 = vunpack.c.l.b16 %v2667
        %v2796 = vunpack.c.l.b16 %v2668
        %v2797 = vunpack.c.l.b16 %v2669
        %v2798 = vunpack.c.l.b16 %v2670
        %v2799 = vunpack.c.l.b16 %v2671
        %v2800 = vunpack.c.l.b16 %v2672
        %v2801 = vunpack.c.l.b16 %v2673
        %v2802 = vunpack.c.l.b16 %v2674
        %v2803 = vunpack.c.l.b16 %v2675
        %v2804 = vunpack.c.l.b16 %v2676
        %v2805 = vunpack.c.l.b16 %v2677
        %v2806 = vunpack.c.l.b16 %v2678
        %v2807 = vunpack.c.l.b16 %v2679
        %v2808 = vunpack.c.l.b16 %v2680
        %v2809 = vunpack.c.l.b16 %v2681
        %v2810 = vunpack.c.l.b16 %v2682
        %v2811 = vunpack.c.l.b16 %v2683
        %v2812 = vunpack.c.l.b16 %v2684
        %v2813 = vunpack.c.l.b16 %v2685
        %v2814 = vunpack.c.l.b16 %v2686
        %v2815 = vunpack.c.l.b16 %v2687
        %v2816 = vunpack.c.l.b16 %v2688
        %v2817 = vunpack.c.l.b16 %v2689
        %v2818 = vunpack.c.l.b16 %v2690
        %v2819 = vunpack.c.l.b16 %v2691
        %v2820 = vunpack.c.l.b16 %v2692
        %v2821 = vunpack.c.l.b16 %v2693
        %v2822 = vunpack.c.l.b16 %v2694
        %v2823 = vunpack.c.l.b16 %v2695
        %v2824 = vunpack.c.l.b16 %v2696
        %v2825 = vunpack.c.l.b16 %v2697
        %v2826 = vunpack.c.l.b16 %v2698
        %v2827 = vunpack.c.l.b16 %v2699
        %v2828 = vunpack.c.l.b16 %v2700
        %v2829 = vunpack.c.l.b16 %v2701
        %v2830 = vunpack.c.l.b16 %v2702
        %v2831 = vunpack.c.l.b16 %v2703
        %v2832 = vunpack.c.l.b16 %v2704
        %v2833 = vpack.c.b16 %v2770, %v2769
        %v2834 = vpack.c.b16 %v2772, %v2771
        %v2835 = vpack.c.b16 %v2774, %v2773
        %v2836 = vpack.c.b16 %v2776, %v2775
        %v2837 = vpack.c.b16 %v2778, %v2777
        %v2838 = vpack.c.b16 %v2780, %v2779
        %v2839 = vpack.c.b16 %v2782, %v2781
        %v2840 = vpack.c.b16 %v2784, %v2783
        %v2841 = vpack.c.b16 %v2786, %v2785
        %v2842 = vpack.c.b16 %v2788, %v2787
        %v2843 = vpack.c.b16 %v2790, %v2789
        %v2844 = vpack.c.b16 %v2792, %v2791
        %v2845 = vpack.c.b16 %v2794, %v2793
        %v2846 = vpack.c.b16 %v2796, %v2795
        %v2847 = vpack.c.b16 %v2798, %v2797
        %v2848 = vpack.c.b16 %v2800, %v2799
        %v2849 = vpack.c.b16 %v2802, %v2801
        %v2850 = vpack.c.b16 %v2804, %v2803
        %v2851 = vpack.c.b16 %v2806, %v2805
        %v2852 = vpack.c.b16 %v2808, %v2807
        %v2853 = vpack.c.b16 %v2810, %v2809
        %v2854 = vpack.c.b16 %v2812, %v2811
        %v2855 = vpack.c.b16 %v2814, %v2813
        %v2856 = vpack.c.b16 %v2816, %v2815
        %v2857 = vpack.c.b16 %v2818, %v2817
        %v2858 = vpack.c.b16 %v2820, %v2819
        %v2859 = vpack.c.b16 %v2822, %v2821
        %v2860 = vpack.c.b16 %v2824, %v2823
        %v2861 = vpack.c.b16 %v2826, %v2825
        %v2862 = vpack.c.b16 %v2828, %v2827
        %v2863 = vpack.c.b16 %v2830, %v2829
        %v2864 = vpack.c.b16 %v2832, %v2831
        %2897 = vst [vmem:[%s215] sm:$0xff] %v2833
        %2898 = vst [vmem:[%s215 + $0x8] sm:$0xff] %v2834
        %2899 = vst [vmem:[%s215 + $0x10] sm:$0xff] %v2835
        %2900 = vst [vmem:[%s215 + $0x18] sm:$0xff] %v2836
        %2901 = vst [vmem:[%s215 + $0x20] sm:$0xff] %v2837
        %2902 = vst [vmem:[%s215 + $0x28] sm:$0xff] %v2838
        %2903 = vst [vmem:[%s215 + $0x30] sm:$0xff] %v2839
        %2904 = vst [vmem:[%s215 + $0x38] sm:$0xff] %v2840
        %2905 = vst [vmem:[%s215 + $0x40] sm:$0xff] %v2841
        %2906 = vst [vmem:[%s215 + $0x48] sm:$0xff] %v2842
        %2907 = vst [vmem:[%s215 + $0x50] sm:$0xff] %v2843
        %2908 = vst [vmem:[%s215 + $0x58] sm:$0xff] %v2844
        %2909 = vst [vmem:[%s215 + $0x60] sm:$0xff] %v2845
        %2910 = vst [vmem:[%s215 + $0x68] sm:$0xff] %v2846
        %2911 = vst [vmem:[%s215 + $0x70] sm:$0xff] %v2847
        %2912 = vst [vmem:[%s215 + $0x78] sm:$0xff] %v2848
        %2913 = vst [vmem:[%s215 + $0x80] sm:$0xff] %v2849
        %2914 = vst [vmem:[%s215 + $0x88] sm:$0xff] %v2850
        %2915 = vst [vmem:[%s215 + $0x90] sm:$0xff] %v2851
        %2916 = vst [vmem:[%s215 + $0x98] sm:$0xff] %v2852
        %2917 = vst [vmem:[%s215 + $0xa0] sm:$0xff] %v2853
        %2918 = vst [vmem:[%s215 + $0xa8] sm:$0xff] %v2854
        %2919 = vst [vmem:[%s215 + $0xb0] sm:$0xff] %v2855
        %2920 = vst [vmem:[%s215 + $0xb8] sm:$0xff] %v2856
        %2921 = vst [vmem:[%s215 + $0xc0] sm:$0xff] %v2857
        %2922 = vst [vmem:[%s215 + $0xc8] sm:$0xff] %v2858
        %2923 = vst [vmem:[%s215 + $0xd0] sm:$0xff] %v2859
        %2924 = vst [vmem:[%s215 + $0xd8] sm:$0xff] %v2860
        %2925 = vst [vmem:[%s215 + $0xe0] sm:$0xff] %v2861
        %2926 = vst [vmem:[%s215 + $0xe8] sm:$0xff] %v2862
        %2927 = vst [vmem:[%s215 + $0xf0] sm:$0xff] %v2863
        %2928 = vst [vmem:[%s215 + $0xf8] sm:$0xff] %v2864
        %s2929 = sand.u32 %s115, 1
        %s2930 = scalar_lea.sflag [#allocation4], %s2929
        %s2931 = sand.u32 %s115, 1
        %s2932 = smul.addr %s2931, 256
        %s2933 = scalar_lea.vmem [#allocation5], %s2932
        // Predicated region
        $region37: #{tpu_custom_call.1} parent=31 // pred_check
          %p2934 = pneg %p125
        $region38: #{tpu_custom_call.1} parent=31 // pred_check_branch
          %2936 = sbr.rel (%p2934) target = $region40
        $region39: #{tpu_custom_call.1} parent=31 // pred_region
          %s2938 = ssub.s32 4096, 4096
          %2939 = vsyncadd %s2930, %s2938
          %s2940 = smul.addr %s25, 16
          %s2941 = smul.addr %s24, 64
          %s2942 = sadd.s32 %s2940, %s2941
          %s2943 = smul.addr %s2942, 64
          %s2944 = scalar_lea.hbm %s3, %s2943
          %s2945 = sshll.u32 %s2933, 4
          %s2946 = int_to_ptr.vmem [resolvable:$true] %s2945
          %2951 = dma.vmem_to_hbm [thread:$0]  %s2946, 4096, %s2944, %s2930, 1024, 1024, 64
        $region40: #{tpu_custom_call.1} parent=31 // pred_fallthru
          _
      $region32: #{tpu_custom_call.1} parent=5 // pred_fallthru
        _
      %p2952 = scmp.le.s32.totalorder 2, %s15
      // Predicated region
      $region41: #{tpu_custom_call.1} parent=5 // pred_check
        %p2953 = pneg %p2952
      $region42: #{tpu_custom_call.1} parent=5 // pred_check_branch
        %2955 = sbr.rel (%p2953) target = $region44
      $region43: #{tpu_custom_call.1} parent=5 // pred_region
        %s2956 = ssub.s32 %s15, 2
        // Predicated region
        $region45: #{tpu_custom_call.1} parent=43 // pred_check
          %p2957 = pneg %p131
        $region46: #{tpu_custom_call.1} parent=43 // pred_check_branch
          %2959 = sbr.rel (%p2957) target = $region48
        $region47: #{tpu_custom_call.1} parent=43 // pred_region
          %s2960 = sand.u32 %s116, 1
          %s2961 = scalar_lea.sflag [#allocation4], %s2960
          %s2962 = sand.u32 %s116, 1
          %s2963 = smul.addr %s2962, 256
          %s2964 = scalar_lea.vmem [#allocation5], %s2963
          %2965 = dma.done %s2961, 4096
        $region48: #{tpu_custom_call.1} parent=43 // pred_fallthru
          _
      $region44: #{tpu_custom_call.1} parent=5 // pred_fallthru
        _
    $region6: #{tpu_custom_call.1} parent=1 // loop_footer
      %s19 = sadd.s32 1, %s15
    $region7: #{tpu_custom_call.1} parent=1 // loop_footer_branch
      %14 = sbr.rel target = $region3
    $region8: #{tpu_custom_call.1} parent=1 // loop_exit
      _
    %2966 = vsyncpa [#allocation3], 1
    %s2967 = scalar_lea.sflag [#allocation3], 1
    %2968 = vsyncpa %s2967, 1
    %2969 = vsyncpa [#allocation4], 1
    %s2970 = scalar_lea.sflag [#allocation4], 1
    %2971 = vsyncpa %s2970, 1

</llo_original>
